<compile_context>
chip_gen: v7x
topology: tpu7x:2x2x1
jax: 0.10.0
libtpu: 0.0.40
codegen_flags: <defaults>
</compile_context>

<pallas_src>
import dataclasses

import numpy as np
import jax
import jax.numpy as jnp
from jax.experimental import pallas as pl
from jax.experimental.pallas import tpu as pltpu


# ----------------------------------------------------------------------------
# Per-generation tuning (VMEM budget / tile sizes) + safe-fallback machinery
# ----------------------------------------------------------------------------
@dataclasses.dataclass(frozen=True)
class _TpuConfig:
    is_v7x: bool
    vmem_limit_bytes: int
    fwd_tm: int            # default batch tile for the fused MLP forward
    reduce_tile_rows: int  # default row tile for the (rows, lanes) flat reduction


_TPU_CFG_CACHE = None


def _tpu_config():
    """Crude per-generation defaults: v5e/v6e have 128 MiB VMEM -> big tiles and
    a ~96 MiB scoped limit; v7x has 64 MiB -> tighter budget, smaller tiles."""
    global _TPU_CFG_CACHE
    if _TPU_CFG_CACHE is not None:
        return _TPU_CFG_CACHE
    kind = ""
    try:
        kind = jax.devices()[0].device_kind.lower()
    except Exception:
        pass
    if "v7" in kind:
        cfg = _TpuConfig(True, 48 << 20, 256, 512)     # 64 MiB physical VMEM
    elif "v6" in kind or "v5" in kind:
        cfg = _TpuConfig(False, 96 << 20, 512, 2048)   # 128 MiB physical VMEM
    else:
        cfg = _TpuConfig(False, 32 << 20, 256, 1024)   # conservative default
    _TPU_CFG_CACHE = cfg
    return cfg


_FAST_PATH_OK = {}  # site-name -> bool: did the aggressive pallas_call lower/run?


def _try_fast(site, fast_fn, safe_fn):
    """Run the aggressively-tuned pallas_call first; if this JAX/Mosaic version
    or chip rejects it (e.g. pl.Buffered(1) or CORE_PARALLEL), permanently fall
    back to the conservative configuration for this call site."""
    state = _FAST_PATH_OK.get(site)
    if state is False:
        return safe_fn()
    try:
        out = fast_fn()
        if state is None:
            jax.block_until_ready(out)   # surface compile/runtime errors once
            _FAST_PATH_OK[site] = True
        return out
    except Exception:
        _FAST_PATH_OK[site] = False
        return safe_fn()


def _round_up(v, m):
    return ((v + m - 1) // m) * m


def _pad_to(x, target_shape):
    pads = [(0, t - s) for s, t in zip(x.shape, target_shape)]
    if any(p[1] for p in pads):
        return jnp.pad(x, pads)
    return x


# ----------------------------------------------------------------------------
# Forward-pass kernel for the wrapped module: Linear -> ReLU -> Linear (+bias)
# ----------------------------------------------------------------------------
def _mlp_forward_kernel(x_ref, w1_ref, b1_ref, w2_ref, b2_ref, o_ref):
    # MXU dots run in the weights' dtype (pass bf16 weights for bf16-native MXU
    # throughput) with f32 accumulation; bias + ReLU stay f32 on the VPU.
    x = x_ref[...].astype(w1_ref.dtype)
    h = jnp.dot(x, w1_ref[...], preferred_element_type=jnp.float32)
    h = jnp.maximum(h + b1_ref[...].astype(jnp.float32), 0.0)
    o = jnp.dot(h.astype(w2_ref.dtype), w2_ref[...],
                preferred_element_type=jnp.float32)
    o = o + b2_ref[...].astype(jnp.float32)
    o_ref[...] = o.astype(o_ref.dtype)


def _mlp_pallas_call(xp, w1p, b1p, w2p, b2p, *, tm, out_dtype, fast):
    Bp, Dp = xp.shape
    Hp = w1p.shape[1]
    Op = w2p.shape[1]
    cfg = _tpu_config()
    if fast:
        # Weights/biases have a constant index_map (never revisited with a new
        # block) -> a single VMEM buffer suffices; halves resident weight VMEM.
        w_mode = pl.Buffered(1)
        # Only CORE_PARALLEL actually shards a grid axis across v7x's two TCs.
        sem = (pltpu.CORE_PARALLEL,) if cfg.is_v7x else ("parallel",)
    else:
        w_mode = None
        sem = ("parallel",)

    def wspec(shape):
        if w_mode is None:
            return pl.BlockSpec(shape, lambda i: (0, 0))
        return pl.BlockSpec(shape, lambda i: (0, 0), pipeline_mode=w_mode)

    return pl.pallas_call(
        _mlp_forward_kernel,
        out_shape=jax.ShapeDtypeStruct((Bp, Op), out_dtype),
        grid=(Bp // tm,),
        in_specs=[
            pl.BlockSpec((tm, Dp), lambda i: (i, 0)),   # activations: batch-tiled
            wspec((Dp, Hp)),                            # weights: VMEM-resident
            wspec((1, Hp)),
            wspec((Hp, Op)),
            wspec((1, Op)),
        ],
        out_specs=pl.BlockSpec((tm, Op), lambda i: (i, 0)),
        compiler_params=pltpu.CompilerParams(
            dimension_semantics=sem,
            vmem_limit_bytes=cfg.vmem_limit_bytes),
    )(xp, w1p, b1p, w2p, b2p)


def mlp_forward(x, w1, b1, w2, b2, *, tm=None):
    """Fused MLP forward. x: (B, D_in), w1: (D_in, H), b1: (1, H),
    w2: (H, D_out), b2: (1, D_out) -> (B, D_out) in x.dtype.

    Batch is tiled (padded so there are no partial blocks); feature dims are
    padded to multiples of 128 so every store is lane-dense."""
    B, D_in = x.shape
    H = w1.shape[1]
    D_out = w2.shape[1]
    cfg = _tpu_config()
    if tm is None:
        tm = cfg.fwd_tm

    Bp = _round_up(B, 8)
    TM = max(8, min(_round_up(tm, 8), Bp))
    Bp = _round_up(Bp, TM)                 # exact division -> no partial blocks
    Dp = _round_up(D_in, 128)
    Hp = _round_up(H, 128)
    Op = _round_up(D_out, 128)

    # TODO(synk): add a K-tiled path (grid axis "arbitrary" over Dp/Hp chunks with
    # an f32 VMEM accumulator + pl.when init/finalize) for layer widths where the
    # resident Dp*Hp + Hp*Op weights exceed the VMEM budget (matters on v7x).

    xp = _pad_to(x, (Bp, Dp))
    w1p = _pad_to(w1, (Dp, Hp))
    b1p = _pad_to(b1.astype(jnp.float32), (1, Hp))
    w2p = _pad_to(w2, (Hp, Op))
    b2p = _pad_to(b2.astype(jnp.float32), (1, Op))

    out = _try_fast(
        "mlp_forward",
        lambda: _mlp_pallas_call(xp, w1p, b1p, w2p, b2p,
                                 tm=TM, out_dtype=x.dtype, fast=True),
        lambda: _mlp_pallas_call(xp, w1p, b1p, w2p, b2p,
                                 tm=TM, out_dtype=x.dtype, fast=False),
    )
    return out[:B, :D_out]


# ----------------------------------------------------------------------------
# Gradient-sync kernel: flat all-reduce(SUM) / world_size, as a full-sublane
# (rows, 512) slab tiled with lane-dense (tile_rows, 512) blocks.
# ----------------------------------------------------------------------------
_REDUCE_LANES = 512  # multiple of 128; full (8,128) vreg tiles, lane-dense stores


def _make_flat_mean_kernel(world_size):
    inv_ws = 1.0 / float(world_size)

    def kernel(*refs):
        in_refs = refs[:world_size]
        o_ref = refs[world_size]
        acc = in_refs[0][...].astype(jnp.float32)
        for r in range(1, world_size):       # unrolled VPU adds, f32 accumulate
            acc = acc + in_refs[r][...].astype(jnp.float32)
        o_ref[...] = (acc * inv_ws).astype(o_ref.dtype)

    return kernel


def _flat_mean_pallas_call(flat2d, *, tile_rows, fast):
    world_size = len(flat2d)
    rows, lanes = flat2d[0].shape
    cfg = _tpu_config()
    if fast and cfg.is_v7x:
        sem = (pltpu.CORE_PARALLEL,)   # shard the HBM-bound loop over both TCs
        in_block = pl.BlockSpec((tile_rows, lanes), lambda i: (i, 0),
                                pipeline_mode=pl.Buffered(3))
    else:
        sem = ("parallel",)
        in_block = pl.BlockSpec((tile_rows, lanes), lambda i: (i, 0))
    out_block = pl.BlockSpec((tile_rows, lanes), lambda i: (i, 0))
    return pl.pallas_call(
        _make_flat_mean_kernel(world_size),
        out_shape=jax.ShapeDtypeStruct((rows, lanes), flat2d[0].dtype),
        grid=(rows // tile_rows,),
        in_specs=[in_block] * world_size,
        out_specs=out_block,
        # Write the mean in place over replica 0's flat buffer (PyTorch div_()):
        # no separate HBM output allocation.
        input_output_aliases={0: 0},
        compiler_params=pltpu.CompilerParams(
            dimension_semantics=sem,
            vmem_limit_bytes=cfg.vmem_limit_bytes),
    )(*flat2d)


def flat_allreduce_mean(flat2d_per_replica, tile_rows):
    """flat2d_per_replica: list (len = world_size) of (rows, lanes) slabs with
    rows % tile_rows == 0.  Returns the (rows, lanes) mean-reduced slab."""
    rows, lanes = flat2d_per_replica[0].shape
    assert rows % tile_rows == 0 and tile_rows % 8 == 0 and lanes % 128 == 0
    cfg = _tpu_config()
    if cfg.is_v7x:
        return _try_fast(
            "flat_mean",
            lambda: _flat_mean_pallas_call(flat2d_per_replica,
                                           tile_rows=tile_rows, fast=True),
            lambda: _flat_mean_pallas_call(flat2d_per_replica,
                                           tile_rows=tile_rows, fast=False))
    return _flat_mean_pallas_call(flat2d_per_replica, tile_rows=tile_rows, fast=False)


def _plan_flat_layout(n_elems, world_size, *, lanes=_REDUCE_LANES, tile_rows=None):
    """Pick (rows, tile_rows) for viewing an n_elems flat gradient as a
    full-sublane (rows, lanes) slab with tile_rows | rows (no partial blocks),
    keeping (world_size+1) double-buffered tiles under the scoped VMEM budget."""
    cfg = _tpu_config()
    if tile_rows is None:
        tile_rows = cfg.reduce_tile_rows
    per_stream = (cfg.vmem_limit_bytes // 2) // (2 * (world_size + 1))
    max_rows = max(8, (per_stream // (lanes * 4)) // 8 * 8)
    tile_rows = max(8, min(_round_up(tile_rows, 8), max_rows))
    rows = _round_up(pl.cdiv(n_elems, lanes), 8)
    tile_rows = min(tile_rows, rows)
    rows = _round_up(rows, tile_rows)
    return rows, tile_rows


def _flatten_and_pad_2d(tensors, rows, lanes):
    """One concatenate (the _flatten_dense_tensors copy, zero tail fused in)
    followed by a free row-major reshape to a full-sublane (rows, lanes) slab."""
    pieces = [jnp.reshape(t, (-1,)) for t in tensors]
    n = sum(int(p.shape[0]) for p in pieces)
    pad = rows * lanes - n
    if pad > 0:
        pieces.append(jnp.zeros((pad,), pieces[0].dtype))
    return jnp.reshape(jnp.concatenate(pieces, axis=0), (rows, lanes))


def unflatten_dense_tensors(flat, like_tensors):
    out, i = [], 0
    for t in like_tensors:
        n = int(t.size)
        out.append(jnp.reshape(flat[i:i + n], t.shape))
        i += n
    return out


# ----------------------------------------------------------------------------
# FlatDDPParameters analogue
# ----------------------------------------------------------------------------
class FlatDDPParametersJAX:
    """JAX/Pallas analogue of FlatDDPParameters wrapping a 2-layer MLP.

    Weights are stored in bf16 (MXU-native, half the DMA/VMEM); biases stay f32.
    Gradient sync mirrors _flatten_dense_tensors + all_reduce(SUM) +
    div_(world_size) + copy-back, on a single host with per-replica inputs."""

    def __init__(self, params, world_size, param_dtype=jnp.bfloat16):
        # dist.broadcast(p, src=0): every replica adopts rank-0's params.
        # Single-host simulation -> params ARE rank-0's params already.
        # TODO(synk): multi-host broadcast would use pltpu.make_async_remote_copy.
        self.params = {
            "w1": params["w1"].astype(param_dtype),
            "b1": params["b1"].astype(jnp.float32),
            "w2": params["w2"].astype(param_dtype),
            "b2": params["b2"].astype(jnp.float32),
        }
        self.world_size = world_size

    def forward(self, x, *, tm=None):
        p = self.params
        return mlp_forward(x, p["w1"], p["b1"], p["w2"], p["b2"], tm=tm)

    def finish_gradients_syncronization(self, per_replica_grads, *, tile_rows=None):
        """per_replica_grads: list (len=world_size) of lists of grad arrays (one
        per parameter).  Returns the synced (mean) grads per parameter."""
        if not per_replica_grads or not per_replica_grads[0]:
            return []
        like = per_replica_grads[0]
        n = sum(int(t.size) for t in like)
        rows, tile_rows = _plan_flat_layout(n, self.world_size, tile_rows=tile_rows)
        # TODO(synk): keep a persistent flat gradient buffer that backward writes
        # into directly to remove even the single flatten concatenate below.
        slabs = [_flatten_and_pad_2d(g, rows, _REDUCE_LANES)
                 for g in per_replica_grads]
        reduced = flat_allreduce_mean(slabs, tile_rows)
        reduced_flat = jnp.reshape(reduced, (rows * _REDUCE_LANES,))[:n]
        return unflatten_dense_tensors(reduced_flat, like)


# ----------------------------------------------------------------------------
# Main: deterministic params/inputs, run kernels, verify against pure JAX.
# ----------------------------------------------------------------------------
if __name__ == "__main__":
    key = jax.random.PRNGKey(0)
    k_x, k_w1, k_b1, k_w2, k_b2, k_g = jax.random.split(key, 6)

    batch, d_in, hidden, d_out = 64, 128, 256, 128
    world_size = 4

    params = {
        "w1": jax.random.normal(k_w1, (d_in, hidden), jnp.float32) * 0.1,
        "b1": jax.random.normal(k_b1, (1, hidden), jnp.float32) * 0.1,
        "w2": jax.random.normal(k_w2, (hidden, d_out), jnp.float32) * 0.1,
        "b2": jax.random.normal(k_b2, (1, d_out), jnp.float32) * 0.1,
    }
    x = jax.random.normal(k_x, (batch, d_in), jnp.float32)

    ddp = FlatDDPParametersJAX(params, world_size)

    # ---- forward pass (fused batch-tiled MLP; bf16 MXU operands, f32 acc) ----
    y = ddp.forward(x, tm=16)          # tm=16 -> 4 grid steps, exercises pipelining
    jax.block_until_ready(y)
    y_ref = jnp.maximum(x @ params["w1"] + params["b1"], 0.0) @ params["w2"] + params["b2"]
    np.testing.assert_allclose(np.asarray(y), np.asarray(y_ref), rtol=3e-2, atol=3e-2)

    # ---- gradient synchronization (tiled (rows, 512) flat all-reduce mean) ----
    grad_keys = jax.random.split(k_g, world_size)
    per_replica_grads = []
    for r in range(world_size):
        gk = jax.random.split(grad_keys[r], 4)
        per_replica_grads.append([
            jax.random.normal(gk[0], params["w1"].shape, jnp.float32),
            jax.random.normal(gk[1], params["b1"].shape, jnp.float32),
            jax.random.normal(gk[2], params["w2"].shape, jnp.float32),
            jax.random.normal(gk[3], params["b2"].shape, jnp.float32),
        ])

    # Small tile_rows so the demo exercises the multi-step tiled grid path.
    synced = ddp.finish_gradients_syncronization(per_replica_grads, tile_rows=32)
    jax.block_until_ready(synced)

    for i in range(4):
        ref = sum(per_replica_grads[r][i] for r in range(world_size)) / world_size
        np.testing.assert_allclose(np.asarray(synced[i]), np.asarray(ref),
                                   rtol=1e-5, atol=1e-5)

    print("KERNEL_OK")
</pallas_src>

<mosaic_0001>
module attributes {stable_mosaic.version = 11 : i64} {
  func.func @_mlp_forward_kernel(%arg0: i32, %arg1: memref<16x128xf32, #tpu.memory_space<vmem>>, %arg2: memref<128x256xbf16, #tpu.memory_space<vmem>>, %arg3: memref<1x256xf32, #tpu.memory_space<vmem>>, %arg4: memref<256x128xbf16, #tpu.memory_space<vmem>>, %arg5: memref<1x128xf32, #tpu.memory_space<vmem>>, %arg6: memref<16x128xf32, #tpu.memory_space<vmem>>) attributes {dimension_semantics = [#tpu.dimension_semantics<parallel>], iteration_bounds = array<i64: 4>, scalar_prefetch = 0 : i64, scratch_operands = 0 : i64, tpu.core_type = #tpu.core_type<tc>, window_params = [{transform_indices = @transform_0, window_bounds = array<i64: 16, 128>}, {pipeline_mode = #tpu.pipeline_mode<synchronous>, transform_indices = @transform_1, window_bounds = array<i64: 128, 256>}, {pipeline_mode = #tpu.pipeline_mode<synchronous>, transform_indices = @transform_2, window_bounds = array<i64: 1, 256>}, {pipeline_mode = #tpu.pipeline_mode<synchronous>, transform_indices = @transform_3, window_bounds = array<i64: 256, 128>}, {pipeline_mode = #tpu.pipeline_mode<synchronous>, transform_indices = @transform_4, window_bounds = array<i64: 1, 128>}, {transform_indices = @transform_5, window_bounds = array<i64: 16, 128>}]} {
    %c0 = arith.constant 0 : index
    %c0_0 = arith.constant 0 : index
    %0 = vector.load %arg1[%c0, %c0_0] : memref<16x128xf32, #tpu.memory_space<vmem>>, vector<16x128xf32>
    %1 = arith.truncf %0 : vector<16x128xf32> to vector<16x128xbf16>
    %c0_1 = arith.constant 0 : index
    %c0_2 = arith.constant 0 : index
    %2 = vector.load %arg2[%c0_1, %c0_2] : memref<128x256xbf16, #tpu.memory_space<vmem>>, vector<128x256xbf16>
    %cst = arith.constant dense<0.000000e+00> : vector<16x256xf32>
    %3 = tpu.matmul %1, %2, %cst {dimension_numbers = #tpu.dot_dimension_numbers<[1], [0], [0], [1], [0, 0, 1, 1], [], []>} : vector<16x128xbf16>, vector<128x256xbf16>, vector<16x256xf32> -> vector<16x256xf32>
    %c0_3 = arith.constant 0 : index
    %c0_4 = arith.constant 0 : index
    %4 = vector.load %arg3[%c0_3, %c0_4] : memref<1x256xf32, #tpu.memory_space<vmem>>, vector<1x256xf32>
    %5 = vector.broadcast %4 : vector<1x256xf32> to vector<16x256xf32>
    %6 = arith.addf %3, %5 : vector<16x256xf32>
    %cst_5 = arith.constant 0.000000e+00 : f32
    %7 = vector.broadcast %cst_5 : f32 to vector<16x256xf32>
    %8 = arith.maximumf %6, %7 : vector<16x256xf32>
    %9 = arith.truncf %8 : vector<16x256xf32> to vector<16x256xbf16>
    %c0_6 = arith.constant 0 : index
    %c0_7 = arith.constant 0 : index
    %10 = vector.load %arg4[%c0_6, %c0_7] : memref<256x128xbf16, #tpu.memory_space<vmem>>, vector<256x128xbf16>
    %cst_8 = arith.constant dense<0.000000e+00> : vector<16x128xf32>
    %11 = tpu.matmul %9, %10, %cst_8 {dimension_numbers = #tpu.dot_dimension_numbers<[1], [0], [0], [1], [0, 0, 1, 1], [], []>} : vector<16x256xbf16>, vector<256x128xbf16>, vector<16x128xf32> -> vector<16x128xf32>
    %c0_9 = arith.constant 0 : index
    %c0_10 = arith.constant 0 : index
    %12 = vector.load %arg5[%c0_9, %c0_10] : memref<1x128xf32, #tpu.memory_space<vmem>>, vector<1x128xf32>
    %13 = vector.broadcast %12 : vector<1x128xf32> to vector<16x128xf32>
    %14 = arith.addf %11, %13 : vector<16x128xf32>
    %c0_11 = arith.constant 0 : index
    %c0_12 = arith.constant 0 : index
    %15 = vector.load %arg6[%c0_11, %c0_12] : memref<16x128xf32, #tpu.memory_space<vmem>>, vector<16x128xf32>
    tpu.vector_store %arg6[%c0_11, %c0_12], %14 {strides = array<i32>} : memref<16x128xf32, #tpu.memory_space<vmem>>, vector<16x128xf32>,
    return
  }
  func.func @transform_0(%arg0: i32) -> (i32, i32) {
    %c0_i32 = arith.constant 0 : i32
    %c0_i32_0 = arith.constant 0 : i32
    return %arg0, %c0_i32 : i32, i32
  }
  func.func @transform_1(%arg0: i32) -> (i32, i32) {
    %c0_i32 = arith.constant 0 : i32
    %c0_i32_0 = arith.constant 0 : i32
    %c0_i32_1 = arith.constant 0 : i32
    return %c0_i32, %c0_i32_0 : i32, i32
  }
  func.func @transform_2(%arg0: i32) -> (i32, i32) {
    %c0_i32 = arith.constant 0 : i32
    %c0_i32_0 = arith.constant 0 : i32
    %c0_i32_1 = arith.constant 0 : i32
    return %c0_i32, %c0_i32_0 : i32, i32
  }
  func.func @transform_3(%arg0: i32) -> (i32, i32) {
    %c0_i32 = arith.constant 0 : i32
    %c0_i32_0 = arith.constant 0 : i32
    %c0_i32_1 = arith.constant 0 : i32
    return %c0_i32, %c0_i32_0 : i32, i32
  }
  func.func @transform_4(%arg0: i32) -> (i32, i32) {
    %c0_i32 = arith.constant 0 : i32
    %c0_i32_0 = arith.constant 0 : i32
    %c0_i32_1 = arith.constant 0 : i32
    return %c0_i32, %c0_i32_0 : i32, i32
  }
  func.func @transform_5(%arg0: i32) -> (i32, i32) {
    %c0_i32 = arith.constant 0 : i32
    %c0_i32_0 = arith.constant 0 : i32
    return %arg0, %c0_i32 : i32, i32
  }
}

module attributes {stable_mosaic.version = 11 : i64} {
  func.func @_mlp_forward_kernel(%arg0: i32, %arg1: memref<16x128xf32, #tpu.memory_space<vmem>>, %arg2: memref<128x256xbf16, #tpu.memory_space<vmem>>, %arg3: memref<1x256xf32, #tpu.memory_space<vmem>>, %arg4: memref<256x128xbf16, #tpu.memory_space<vmem>>, %arg5: memref<1x128xf32, #tpu.memory_space<vmem>>, %arg6: memref<16x128xf32, #tpu.memory_space<vmem>>) attributes {dimension_semantics = [#tpu.dimension_semantics<parallel>], iteration_bounds = array<i64: 4>, scalar_prefetch = 0 : i64, scratch_operands = 0 : i64, tpu.core_type = #tpu.core_type<tc>, window_params = [{transform_indices = @transform_0, window_bounds = array<i64: 16, 128>}, {pipeline_mode = #tpu.pipeline_mode<synchronous>, transform_indices = @transform_1, window_bounds = array<i64: 128, 256>}, {pipeline_mode = #tpu.pipeline_mode<synchronous>, transform_indices = @transform_2, window_bounds = array<i64: 1, 256>}, {pipeline_mode = #tpu.pipeline_mode<synchronous>, transform_indices = @transform_3, window_bounds = array<i64: 256, 128>}, {pipeline_mode = #tpu.pipeline_mode<synchronous>, transform_indices = @transform_4, window_bounds = array<i64: 1, 128>}, {transform_indices = @transform_5, window_bounds = array<i64: 16, 128>}]} {
    %c0 = arith.constant 0 : index
    %c0_0 = arith.constant 0 : index
    %0 = vector.load %arg1[%c0, %c0_0] : memref<16x128xf32, #tpu.memory_space<vmem>>, vector<16x128xf32>
    %1 = arith.truncf %0 : vector<16x128xf32> to vector<16x128xbf16>
    %c0_1 = arith.constant 0 : index
    %c0_2 = arith.constant 0 : index
    %2 = vector.load %arg2[%c0_1, %c0_2] : memref<128x256xbf16, #tpu.memory_space<vmem>>, vector<128x256xbf16>
    %cst = arith.constant dense<0.000000e+00> : vector<16x256xf32>
    %3 = tpu.matmul %1, %2, %cst {dimension_numbers = #tpu.dot_dimension_numbers<[1], [0], [0], [1], [0, 0, 1, 1], [], []>} : vector<16x128xbf16>, vector<128x256xbf16>, vector<16x256xf32> -> vector<16x256xf32>
    %c0_3 = arith.constant 0 : index
    %c0_4 = arith.constant 0 : index
    %4 = vector.load %arg3[%c0_3, %c0_4] : memref<1x256xf32, #tpu.memory_space<vmem>>, vector<1x256xf32>
    %5 = vector.broadcast %4 : vector<1x256xf32> to vector<16x256xf32>
    %6 = arith.addf %3, %5 : vector<16x256xf32>
    %cst_5 = arith.constant 0.000000e+00 : f32
    %7 = vector.broadcast %cst_5 : f32 to vector<16x256xf32>
    %8 = arith.maximumf %6, %7 : vector<16x256xf32>
    %9 = arith.truncf %8 : vector<16x256xf32> to vector<16x256xbf16>
    %c0_6 = arith.constant 0 : index
    %c0_7 = arith.constant 0 : index
    %10 = vector.load %arg4[%c0_6, %c0_7] : memref<256x128xbf16, #tpu.memory_space<vmem>>, vector<256x128xbf16>
    %cst_8 = arith.constant dense<0.000000e+00> : vector<16x128xf32>
    %11 = tpu.matmul %9, %10, %cst_8 {dimension_numbers = #tpu.dot_dimension_numbers<[1], [0], [0], [1], [0, 0, 1, 1], [], []>} : vector<16x256xbf16>, vector<256x128xbf16>, vector<16x128xf32> -> vector<16x128xf32>
    %c0_9 = arith.constant 0 : index
    %c0_10 = arith.constant 0 : index
    %12 = vector.load %arg5[%c0_9, %c0_10] : memref<1x128xf32, #tpu.memory_space<vmem>>, vector<1x128xf32>
    %13 = vector.broadcast %12 : vector<1x128xf32> to vector<16x128xf32>
    %14 = arith.addf %11, %13 : vector<16x128xf32>
    %c0_11 = arith.constant 0 : index
    %c0_12 = arith.constant 0 : index
    %15 = vector.load %arg6[%c0_11, %c0_12] : memref<16x128xf32, #tpu.memory_space<vmem>>, vector<16x128xf32>
    tpu.vector_store %arg6[%c0_11, %c0_12], %14 {strides = array<i32>} : memref<16x128xf32, #tpu.memory_space<vmem>>, vector<16x128xf32>,
    return
  }
  func.func @transform_0(%arg0: i32) -> (i32, i32) {
    %c0_i32 = arith.constant 0 : i32
    %c0_i32_0 = arith.constant 0 : i32
    return %arg0, %c0_i32 : i32, i32
  }
  func.func @transform_1(%arg0: i32) -> (i32, i32) {
    %c0_i32 = arith.constant 0 : i32
    %c0_i32_0 = arith.constant 0 : i32
    %c0_i32_1 = arith.constant 0 : i32
    return %c0_i32, %c0_i32_0 : i32, i32
  }
  func.func @transform_2(%arg0: i32) -> (i32, i32) {
    %c0_i32 = arith.constant 0 : i32
    %c0_i32_0 = arith.constant 0 : i32
    %c0_i32_1 = arith.constant 0 : i32
    return %c0_i32, %c0_i32_0 : i32, i32
  }
  func.func @transform_3(%arg0: i32) -> (i32, i32) {
    %c0_i32 = arith.constant 0 : i32
    %c0_i32_0 = arith.constant 0 : i32
    %c0_i32_1 = arith.constant 0 : i32
    return %c0_i32, %c0_i32_0 : i32, i32
  }
  func.func @transform_4(%arg0: i32) -> (i32, i32) {
    %c0_i32 = arith.constant 0 : i32
    %c0_i32_0 = arith.constant 0 : i32
    %c0_i32_1 = arith.constant 0 : i32
    return %c0_i32, %c0_i32_0 : i32, i32
  }
  func.func @transform_5(%arg0: i32) -> (i32, i32) {
    %c0_i32 = arith.constant 0 : i32
    %c0_i32_0 = arith.constant 0 : i32
    return %arg0, %c0_i32 : i32, i32
  }
}

</mosaic_0001>

<llo_original>
// kernel: tpu_custom_call.1
$region0: #{tpu_custom_call.1}
  #allocation0 [shape = 'u32[]', space=smem, size = 0x4, offset = 0x4, fixed_abs, tag = 'smem constant byte address 0x4 - core index']
  #allocation1 [shape = 'u32[144,128]{1,0:T(1,128)}', space=vmem, size = 0x12000, scoped, tag = 'internal scratch']
  %s0 = inlined_call_operand.hbm [shape: f32[64,128], index: 0, kind: input, shape index: {}]
  %s1 = inlined_call_operand.hbm [shape: bf16[128,256], index: 1, kind: input, shape index: {}]
  %s2 = inlined_call_operand.vmem [shape: f32[1,256], index: 2, kind: input, shape index: {}]
  %s3 = inlined_call_operand.hbm [shape: bf16[256,128], index: 3, kind: input, shape index: {}]
  %s4 = inlined_call_operand.vmem [shape: f32[1,128], index: 4, kind: input, shape index: {}]
  %s5 = inlined_call_operand.hbm [shape: f32[64,128], index: 5, kind: output, shape index: {}]
  %s6 = sld [smem:[#allocation0]]
  $region65: #{tpu_custom_call.1} parent=0
    _
  %s8 = ssub.s32 1, %s6
  %s9 = scalar_select 0, %s8, %s6
  $region1: #{tpu_custom_call.1} parent=0
    #allocation2 [shape = 'u8[16384]{0}', space=vmem, size = 0x4000, scoped, tag = 'input window, operand 0']
    #allocation3 [shape = 's32[2]{0}', space=sflag, size = 0x8, scoped, tag = 'scoped memory for tpu_custom_call.1']
    #allocation4 [shape = 's32[2]{0}', space=sflag, size = 0x8, scoped, tag = 'scoped memory for tpu_custom_call.1']
    #allocation5 [shape = 'u8[65536]{0}', space=vmem, size = 0x10000, scoped, tag = 'input window, operand 1, single buffered']
    #allocation6 [shape = 's32[1]{0}', space=sflag, size = 0x4, scoped, tag = 'scoped memory for tpu_custom_call.1']
    #allocation7 [shape = 'u8[65536]{0}', space=vmem, size = 0x10000, scoped, tag = 'input window, operand 3, single buffered']
    #allocation8 [shape = 'u8[16384]{0}', space=vmem, size = 0x4000, scoped, tag = 'output window, operand 0']
    %10 = vsyncpa [#allocation3], 0
    %s11 = scalar_lea.sflag [#allocation3], 1
    %12 = vsyncpa %s11, 0
    %13 = vsyncpa [#allocation6], 0
    %14 = vsyncpa [#allocation4], 0
    %s15 = scalar_lea.sflag [#allocation4], 1
    %16 = vsyncpa %s15, 0
    loop: start=0, step=1, limit=6
    $region2: #{tpu_custom_call.1} parent=1 // loop_pre_header
      _
    $region3: #{tpu_custom_call.1} parent=1 // loop_header
      %s18 = sphi 0, %s22
      %p19 = scmp.ge.s32.totalorder %s18, 6
      %s28 = sphi 0, %s30
      %s31 = sphi 0, %s28
      %s32 = sphi 0, %s31
      %s48 = sphi 0, %s32
      %s52 = sphi 0, %s52
      %s54 = sphi 0, %s52
      %s55 = sphi 0, %s54
      %s69 = sphi 0, %s55
      %s73 = sphi 0, %s73
      %s75 = sphi 0, %s73
      %s76 = sphi 0, %s75
      %s90 = sphi 0, %s76
      %s94 = sphi 0, %s94
      %s96 = sphi 0, %s94
      %s97 = sphi 0, %s96
      %s111 = sphi 0, %s97
      %s115 = sphi 0, %s115
      %s117 = sphi 0, %s115
      %s118 = sphi 0, %s117
      %s132 = sphi 0, %s118
      %s138 = sphi 0, %s140
      %s141 = sphi 0, %s138
      %s142 = sphi 0, %s141
      %s158 = sphi 0, %s142
    $region4: #{tpu_custom_call.1} parent=1 // loop_header_branch
      %21 = sbr.rel (%p19) target = $region8
    $region5: #{tpu_custom_call.1} parent=1 // loop_body
      %s23 = ssub.s32 %s18, 1
      %s24 = ssub.s32 %s18, 2
      %s25 = sadd.s32 %s18, 1
      %s26 = ssub.s32 %s18, %s25
      %p27 = scmp.eq.s32.totalorder %s26, 0
      %s29 = sadd.s32 %s28, 1
      %s30 = scalar_select %p27, %s28, %s29
      %p33 = pneg %p27
      %p34 = scmp.eq.s32.totalorder %s18, 3
      %p35 = por %p33, %p34
      %p36 = scmp.ne.s32.totalorder %s28, %s31
      %p37 = scmp.eq.s32.totalorder %s18, 0
      %p38 = por %p36, %p37
      %p39 = scmp.ne.s32.totalorder %s28, %s31
      %p40 = scmp.eq.s32.totalorder %s23, 3
      %p41 = por %p39, %p40
      %p42 = scmp.ne.s32.totalorder %s31, %s32
      %p43 = scmp.eq.s32.totalorder %s23, 0
      %p44 = por %p42, %p43
      %p45 = scmp.ne.s32.totalorder %s31, %s32
      %p46 = scmp.eq.s32.totalorder %s24, 3
      %p47 = por %p45, %p46
      %p49 = scmp.ne.s32.totalorder %s32, %s48
      %p50 = scmp.eq.s32.totalorder %s24, 0
      %p51 = por %p49, %p50
      %s53 = sadd.s32 %s52, 1
      %p56 = scmp.eq.s32.totalorder %s18, 3
      %p57 = scmp.ne.s32.totalorder %s52, %s54
      %p58 = scmp.eq.s32.totalorder %s18, 0
      %p59 = por %p57, %p58
      %p60 = scmp.ne.s32.totalorder %s52, %s54
      %p61 = scmp.eq.s32.totalorder %s23, 3
      %p62 = por %p60, %p61
      %p63 = scmp.ne.s32.totalorder %s54, %s55
      %p64 = scmp.eq.s32.totalorder %s23, 0
      %p65 = por %p63, %p64
      %p66 = scmp.ne.s32.totalorder %s54, %s55
      %p67 = scmp.eq.s32.totalorder %s24, 3
      %p68 = por %p66, %p67
      %p70 = scmp.ne.s32.totalorder %s55, %s69
      %p71 = scmp.eq.s32.totalorder %s24, 0
      %p72 = por %p70, %p71
      %s74 = sadd.s32 %s73, 1
      %p77 = scmp.eq.s32.totalorder %s18, 3
      %p78 = scmp.ne.s32.totalorder %s73, %s75
      %p79 = scmp.eq.s32.totalorder %s18, 0
      %p80 = por %p78, %p79
      %p81 = scmp.ne.s32.totalorder %s73, %s75
      %p82 = scmp.eq.s32.totalorder %s23, 3
      %p83 = por %p81, %p82
      %p84 = scmp.ne.s32.totalorder %s75, %s76
      %p85 = scmp.eq.s32.totalorder %s23, 0
      %p86 = por %p84, %p85
      %p87 = scmp.ne.s32.totalorder %s75, %s76
      %p88 = scmp.eq.s32.totalorder %s24, 3
      %p89 = por %p87, %p88
      %p91 = scmp.ne.s32.totalorder %s76, %s90
      %p92 = scmp.eq.s32.totalorder %s24, 0
      %p93 = por %p91, %p92
      %s95 = sadd.s32 %s94, 1
      %p98 = scmp.eq.s32.totalorder %s18, 3
      %p99 = scmp.ne.s32.totalorder %s94, %s96
      %p100 = scmp.eq.s32.totalorder %s18, 0
      %p101 = por %p99, %p100
      %p102 = scmp.ne.s32.totalorder %s94, %s96
      %p103 = scmp.eq.s32.totalorder %s23, 3
      %p104 = por %p102, %p103
      %p105 = scmp.ne.s32.totalorder %s96, %s97
      %p106 = scmp.eq.s32.totalorder %s23, 0
      %p107 = por %p105, %p106
      %p108 = scmp.ne.s32.totalorder %s96, %s97
      %p109 = scmp.eq.s32.totalorder %s24, 3
      %p110 = por %p108, %p109
      %p112 = scmp.ne.s32.totalorder %s97, %s111
      %p113 = scmp.eq.s32.totalorder %s24, 0
      %p114 = por %p112, %p113
      %s116 = sadd.s32 %s115, 1
      %p119 = scmp.eq.s32.totalorder %s18, 3
      %p120 = scmp.ne.s32.totalorder %s115, %s117
      %p121 = scmp.eq.s32.totalorder %s18, 0
      %p122 = por %p120, %p121
      %p123 = scmp.ne.s32.totalorder %s115, %s117
      %p124 = scmp.eq.s32.totalorder %s23, 3
      %p125 = por %p123, %p124
      %p126 = scmp.ne.s32.totalorder %s117, %s118
      %p127 = scmp.eq.s32.totalorder %s23, 0
      %p128 = por %p126, %p127
      %p129 = scmp.ne.s32.totalorder %s117, %s118
      %p130 = scmp.eq.s32.totalorder %s24, 3
      %p131 = por %p129, %p130
      %p133 = scmp.ne.s32.totalorder %s118, %s132
      %p134 = scmp.eq.s32.totalorder %s24, 0
      %p135 = por %p133, %p134
      %s136 = ssub.s32 %s18, %s25
      %p137 = scmp.eq.s32.totalorder %s136, 0
      %s139 = sadd.s32 %s138, 1
      %s140 = scalar_select %p137, %s138, %s139
      %p143 = pneg %p137
      %p144 = scmp.eq.s32.totalorder %s18, 3
      %p145 = por %p143, %p144
      %p146 = scmp.ne.s32.totalorder %s138, %s141
      %p147 = scmp.eq.s32.totalorder %s18, 0
      %p148 = por %p146, %p147
      %p149 = scmp.ne.s32.totalorder %s138, %s141
      %p150 = scmp.eq.s32.totalorder %s23, 3
      %p151 = por %p149, %p150
      %p152 = scmp.ne.s32.totalorder %s141, %s142
      %p153 = scmp.eq.s32.totalorder %s23, 0
      %p154 = por %p152, %p153
      %p155 = scmp.ne.s32.totalorder %s141, %s142
      %p156 = scmp.eq.s32.totalorder %s24, 3
      %p157 = por %p155, %p156
      %p159 = scmp.ne.s32.totalorder %s142, %s158
      %p160 = scmp.eq.s32.totalorder %s24, 0
      %p161 = por %p159, %p160
      %p162 = scmp.le.s32.totalorder 1, %s18
      %p163 = scmp.lt.s32.totalorder %s18, 5
      %p164 = pnand %p162, %p163
      %p165 = pneg %p164
      // Predicated region
      $region9: #{tpu_custom_call.1} parent=5 // pred_check
        _
      $region10: #{tpu_custom_call.1} parent=5 // pred_check_branch
        %167 = sbr.rel (%p164) target = $region12
      $region11: #{tpu_custom_call.1} parent=5 // pred_region
        %s168 = ssub.s32 %s18, 1
        // Predicated region
        $region13: #{tpu_custom_call.1} parent=11 // pred_check
          %p169 = pneg %p65
        $region14: #{tpu_custom_call.1} parent=11 // pred_check_branch
          %171 = sbr.rel (%p169) target = $region16
        $region15: #{tpu_custom_call.1} parent=11 // pred_region
          %s173 = ssub.s32 2048, 2048
          %174 = vsyncadd [#allocation6], %s173
          %s175 = sshll.u32 [#allocation5], 4
          %s176 = int_to_ptr.vmem [resolvable:$true] %s175
          %181 = dma.hbm_to_vmem [thread:$0]  %s1, 2048, %s176, [#allocation6], 128, 128, 8
        $region16: #{tpu_custom_call.1} parent=11 // pred_fallthru
          _
        // Predicated region
        $region17: #{tpu_custom_call.1} parent=11 // pred_check
          %p182 = pneg %p86
        $region18: #{tpu_custom_call.1} parent=11 // pred_check_branch
          %184 = sbr.rel (%p182) target = $region20
        $region19: #{tpu_custom_call.1} parent=11 // pred_region
          _
        $region20: #{tpu_custom_call.1} parent=11 // pred_fallthru
          _
        // Predicated region
        $region21: #{tpu_custom_call.1} parent=11 // pred_check
          %p185 = pneg %p107
        $region22: #{tpu_custom_call.1} parent=11 // pred_check_branch
          %187 = sbr.rel (%p185) target = $region24
        $region23: #{tpu_custom_call.1} parent=11 // pred_region
          %s189 = ssub.s32 2048, 2048
          %190 = vsyncadd [#allocation6], %s189
          %s191 = sshll.u32 [#allocation7], 4
          %s192 = int_to_ptr.vmem [resolvable:$true] %s191
          %197 = dma.hbm_to_vmem [thread:$0]  %s3, 2048, %s192, [#allocation6], 64, 64, 4
        $region24: #{tpu_custom_call.1} parent=11 // pred_fallthru
          _
        // Predicated region
        $region25: #{tpu_custom_call.1} parent=11 // pred_check
          %p198 = pneg %p128
        $region26: #{tpu_custom_call.1} parent=11 // pred_check_branch
          %200 = sbr.rel (%p198) target = $region28
        $region27: #{tpu_custom_call.1} parent=11 // pred_region
          _
        $region28: #{tpu_custom_call.1} parent=11 // pred_fallthru
          _
      $region12: #{tpu_custom_call.1} parent=5 // pred_fallthru
        _
      %p201 = scmp.lt.s32.totalorder %s18, 4
      // Predicated region
      $region29: #{tpu_custom_call.1} parent=5 // pred_check
        %p202 = pneg %p201
      $region30: #{tpu_custom_call.1} parent=5 // pred_check_branch
        %204 = sbr.rel (%p202) target = $region32
      $region31: #{tpu_custom_call.1} parent=5 // pred_region
        // Predicated region
        $region33: #{tpu_custom_call.1} parent=31 // pred_check
          %p205 = pneg %p38
        $region34: #{tpu_custom_call.1} parent=31 // pred_check_branch
          %207 = sbr.rel (%p205) target = $region36
        $region35: #{tpu_custom_call.1} parent=31 // pred_region
          %s208 = sand.u32 %s28, 1
          %s209 = scalar_lea.sflag [#allocation3], %s208
          %s210 = sand.u32 %s28, 1
          %s211 = smul.addr %s210, 16
          %s212 = scalar_lea.vmem [#allocation2], %s211
          %s213 = smul.u32 2, %s18
          %s215 = ssub.s32 256, 256
          %216 = vsyncadd %s209, %s215
          %s217 = smul.addr %s213, 128
          %s218 = scalar_lea.hbm %s0, %s217
          %s219 = sshll.u32 %s212, 4
          %s220 = int_to_ptr.vmem [resolvable:$true] %s219
          %225 = dma.hbm_to_vmem [thread:$0]  %s218, 256, %s220, %s209, 128, 128, 8
        $region36: #{tpu_custom_call.1} parent=31 // pred_fallthru
          _
      $region32: #{tpu_custom_call.1} parent=5 // pred_fallthru
        _
      %p226 = scmp.le.s32.totalorder 1, %s18
      %p227 = scmp.lt.s32.totalorder %s18, 5
      %p228 = pnand %p226, %p227
      %p229 = pneg %p228
      // Predicated region
      $region37: #{tpu_custom_call.1} parent=5 // pred_check
        _
      $region38: #{tpu_custom_call.1} parent=5 // pred_check_branch
        %231 = sbr.rel (%p228) target = $region40
      $region39: #{tpu_custom_call.1} parent=5 // pred_region
        %s232 = ssub.s32 %s18, 1
        %s233 = sand.u32 %s31, 1
        %s234 = scalar_lea.sflag [#allocation3], %s233
        %s235 = sand.u32 %s31, 1
        %s236 = smul.addr %s235, 16
        %s237 = scalar_lea.vmem [#allocation2], %s236
        // Predicated region
        $region41: #{tpu_custom_call.1} parent=39 // pred_check
          %p238 = pneg %p44
        $region42: #{tpu_custom_call.1} parent=39 // pred_check_branch
          %240 = sbr.rel (%p238) target = $region44
        $region43: #{tpu_custom_call.1} parent=39 // pred_region
          %241 = dma.done %s234, 256
        $region44: #{tpu_custom_call.1} parent=39 // pred_fallthru
          _
        // Predicated region
        $region45: #{tpu_custom_call.1} parent=39 // pred_check
          %p242 = pneg %p65
        $region46: #{tpu_custom_call.1} parent=39 // pred_check_branch
          %244 = sbr.rel (%p242) target = $region48
        $region47: #{tpu_custom_call.1} parent=39 // pred_region
          %245 = dma.done [#allocation6], 2048
        $region48: #{tpu_custom_call.1} parent=39 // pred_fallthru
          _
        // Predicated region
        $region49: #{tpu_custom_call.1} parent=39 // pred_check
          %p246 = pneg %p107
        $region50: #{tpu_custom_call.1} parent=39 // pred_check_branch
          %248 = sbr.rel (%p246) target = $region52
        $region51: #{tpu_custom_call.1} parent=39 // pred_region
          %249 = dma.done [#allocation6], 2048
        $region52: #{tpu_custom_call.1} parent=39 // pred_fallthru
          _
        %s250 = sand.u32 %s31, 1
        %s251 = scalar_lea.sflag [#allocation3], %s250
        %s252 = sand.u32 %s31, 1
        %s253 = smul.addr %s252, 16
        %s254 = scalar_lea.vmem [#allocation2], %s253
        %p255 = pneg %p44
        %p256 = pneg %p41
        %p257 = pneg %p65
        %p258 = pneg %p62
        %p259 = pneg %p86
        %p260 = pneg %p83
        %p261 = pneg %p107
        %p262 = pneg %p104
        %p263 = pneg %p128
        %p264 = pneg %p125
        %p265 = pneg %p154
        %p266 = pneg %p151
        %s267 = sand.u32 %s141, 1
        %s268 = scalar_lea.sflag [#allocation4], %s267
        %s269 = sand.u32 %s141, 1
        %s270 = smul.addr %s269, 16
        %s271 = scalar_lea.vmem [#allocation8], %s270
        %s272 = smul.u32 2, %s23
        %s273 = smul.u32 2, %s23
        %v275 = vld [vmem:[%s237] sm:$0xff]
        %v276 = vld [vmem:[%s237 + $0x8] sm:$0xff]
        %v277 = vpack.c.bf16 %v276, %v275
        %v278 = vld [vmem:[#allocation5] sm:$0xff]
        %v279 = vld [vmem:[#allocation5 + $0x8] sm:$0xff]
        %v280 = vld [vmem:[#allocation5 + $0x10] sm:$0xff]
        %v281 = vld [vmem:[#allocation5 + $0x18] sm:$0xff]
        %v282 = vld [vmem:[#allocation5 + $0x20] sm:$0xff]
        %v283 = vld [vmem:[#allocation5 + $0x28] sm:$0xff]
        %v284 = vld [vmem:[#allocation5 + $0x30] sm:$0xff]
        %v285 = vld [vmem:[#allocation5 + $0x38] sm:$0xff]
        %v286 = vld [vmem:[#allocation5 + $0x40] sm:$0xff]
        %v287 = vld [vmem:[#allocation5 + $0x48] sm:$0xff]
        %v288 = vld [vmem:[#allocation5 + $0x50] sm:$0xff]
        %v289 = vld [vmem:[#allocation5 + $0x58] sm:$0xff]
        %v290 = vld [vmem:[#allocation5 + $0x60] sm:$0xff]
        %v291 = vld [vmem:[#allocation5 + $0x68] sm:$0xff]
        %v292 = vld [vmem:[#allocation5 + $0x70] sm:$0xff]
        %v293 = vld [vmem:[#allocation5 + $0x78] sm:$0xff]
        %v294 = vld [vmem:[%s2] sm:$0x3]
        %v296 = vlaneseq
        %v297 = vshrl.u32 %v296, 7
        %v298 = vsub.s32 0, %v297
        %v299 = vrot.slane %v294, %v298
        %v300 = vlaneseq
        %v301 = vshrl.u32 %v300, 7
        %v302 = vsub.s32 1, %v301
        %v303 = vrot.slane %v294, %v302
        %v322 = vunpack.c.l.b16 %v278
        %v323 = vunpack.c.h.b16 %v278
        %v324 = vunpack.c.l.b16 %v279
        %v325 = vunpack.c.h.b16 %v279
        %v326 = vunpack.c.l.b16 %v280
        %v327 = vunpack.c.h.b16 %v280
        %v328 = vunpack.c.l.b16 %v281
        %v329 = vunpack.c.h.b16 %v281
        %v330 = vunpack.c.l.b16 %v282
        %v331 = vunpack.c.h.b16 %v282
        %v332 = vunpack.c.l.b16 %v283
        %v333 = vunpack.c.h.b16 %v283
        %v334 = vunpack.c.l.b16 %v284
        %v335 = vunpack.c.h.b16 %v284
        %v336 = vunpack.c.l.b16 %v285
        %v337 = vunpack.c.h.b16 %v285
        %v338 = vunpack.c.l.b16 %v286
        %v339 = vunpack.c.h.b16 %v286
        %v340 = vunpack.c.l.b16 %v287
        %v341 = vunpack.c.h.b16 %v287
        %v342 = vunpack.c.l.b16 %v288
        %v343 = vunpack.c.h.b16 %v288
        %v344 = vunpack.c.l.b16 %v289
        %v345 = vunpack.c.h.b16 %v289
        %v346 = vunpack.c.l.b16 %v290
        %v347 = vunpack.c.h.b16 %v290
        %v348 = vunpack.c.l.b16 %v291
        %v349 = vunpack.c.h.b16 %v291
        %v350 = vunpack.c.l.b16 %v292
        %v351 = vunpack.c.h.b16 %v292
        %v352 = vunpack.c.l.b16 %v293
        %v353 = vunpack.c.h.b16 %v293
        %v354 = vpack.c.b16 %v324, %v322
        %v355 = vpack.c.b16 %v325, %v323
        %v356 = vpack.c.b16 %v328, %v326
        %v357 = vpack.c.b16 %v329, %v327
        %v358 = vpack.c.b16 %v332, %v330
        %v359 = vpack.c.b16 %v333, %v331
        %v360 = vpack.c.b16 %v336, %v334
        %v361 = vpack.c.b16 %v337, %v335
        %v362 = vpack.c.b16 %v340, %v338
        %v363 = vpack.c.b16 %v341, %v339
        %v364 = vpack.c.b16 %v344, %v342
        %v365 = vpack.c.b16 %v345, %v343
        %v366 = vpack.c.b16 %v348, %v346
        %v367 = vpack.c.b16 %v349, %v347
        %v368 = vpack.c.b16 %v352, %v350
        %v369 = vpack.c.b16 %v353, %v351
        %386 = vmatprep.subr.bf16.mxu0 %v355
        %387 = vmatpush1.bf16.msra.mxu0 %v354
        %388 = vmatprep.subr.bf16.mxu0 %v357
        %389 = vmatpush1.bf16.msra.mxu0 %v356
        %390 = vmatprep.subr.bf16.mxu0 %v359
        %391 = vmatpush1.bf16.msra.mxu0 %v358
        %392 = vmatprep.subr.bf16.mxu0 %v361
        %393 = vmatpush1.bf16.msra.mxu0 %v360
        %394 = vmatprep.subr.bf16.mxu0 %v363
        %395 = vmatpush1.bf16.msra.mxu0 %v362
        %396 = vmatprep.subr.bf16.mxu0 %v365
        %397 = vmatpush1.bf16.msra.mxu0 %v364
        %398 = vmatprep.subr.bf16.mxu0 %v367
        %399 = vmatpush1.bf16.msra.mxu0 %v366
        %400 = vmatprep.subr.bf16.mxu0 %v369
        %401 = vmatpush1.bf16.msra.mxu0 %v368
        %402 = vmatprep.subr.bf16.mxu0 0
        %403 = vmatpush1.bf16.msra.mxu0 0
        %404 = vmatprep.subr.bf16.mxu0 0
        %405 = vmatpush1.bf16.msra.mxu0 0
        %406 = vmatprep.subr.bf16.mxu0 0
        %407 = vmatpush1.bf16.msra.mxu0 0
        %408 = vmatprep.subr.bf16.mxu0 0
        %409 = vmatpush1.bf16.msra.mxu0 0
        %410 = vmatprep.subr.bf16.mxu0 0
        %411 = vmatpush1.bf16.msra.mxu0 0
        %412 = vmatprep.subr.bf16.mxu0 0
        %413 = vmatpush1.bf16.msra.mxu0 0
        %414 = vmatprep.subr.bf16.mxu0 0
        %415 = vmatpush1.bf16.msra.mxu0 0
        %416 = vmatprep.subr.bf16.mxu0 0
        %417 = vmatpush1.bf16.msra.mxu0 0
        %418 = vmatprep.mubr.bf16.mxu0 0
        %419 = vmatmul.mubr.bf16.gmra.mrb[0].mxu0 %v277
        %v420 = vpop.f32.mrb[0].mxu0
        %v421 = vadd.f32 %v299, %v420
        %v422 = vpop.f32.mrb[0].mxu0
        %v423 = vadd.f32 %v303, %v422
        %v424 = vpop.f32.mrb[0].mxu0
        %v425 = vadd.f32 %v299, %v424
        %v426 = vpop.f32.mrb[0].mxu0
        %v427 = vadd.f32 %v303, %v426
        %428 = vdwg.mxu0
        %v429 = vmax.f32 %v421, 0.0
        %v430 = vmax.f32 %v423, 0.0
        %v431 = vmax.f32 %v425, 0.0
        %v432 = vmax.f32 %v427, 0.0
        %v433 = vpack.c.bf16 %v431, %v429
        %v434 = vpack.c.bf16 %v432, %v430
        %v435 = vld [vmem:[#allocation7] sm:$0xf]
        %v436 = vld [vmem:[#allocation7 + $0x4] sm:$0xf]
        %v437 = vld [vmem:[#allocation7 + $0x8] sm:$0xf]
        %v438 = vld [vmem:[#allocation7 + $0xc] sm:$0xf]
        %v439 = vld [vmem:[#allocation7 + $0x10] sm:$0xf]
        %v440 = vld [vmem:[#allocation7 + $0x14] sm:$0xf]
        %v441 = vld [vmem:[#allocation7 + $0x18] sm:$0xf]
        %v442 = vld [vmem:[#allocation7 + $0x1c] sm:$0xf]
        %v443 = vld [vmem:[#allocation7 + $0x20] sm:$0xf]
        %v444 = vld [vmem:[#allocation7 + $0x24] sm:$0xf]
        %v445 = vld [vmem:[#allocation7 + $0x28] sm:$0xf]
        %v446 = vld [vmem:[#allocation7 + $0x2c] sm:$0xf]
        %v447 = vld [vmem:[#allocation7 + $0x30] sm:$0xf]
        %v448 = vld [vmem:[#allocation7 + $0x34] sm:$0xf]
        %v449 = vld [vmem:[#allocation7 + $0x38] sm:$0xf]
        %v450 = vld [vmem:[#allocation7 + $0x3c] sm:$0xf]
        %v451 = vld [vmem:[#allocation7 + $0x40] sm:$0xf]
        %v452 = vld [vmem:[#allocation7 + $0x44] sm:$0xf]
        %v453 = vld [vmem:[#allocation7 + $0x48] sm:$0xf]
        %v454 = vld [vmem:[#allocation7 + $0x4c] sm:$0xf]
        %v455 = vld [vmem:[#allocation7 + $0x50] sm:$0xf]
        %v456 = vld [vmem:[#allocation7 + $0x54] sm:$0xf]
        %v457 = vld [vmem:[#allocation7 + $0x58] sm:$0xf]
        %v458 = vld [vmem:[#allocation7 + $0x5c] sm:$0xf]
        %v459 = vld [vmem:[#allocation7 + $0x60] sm:$0xf]
        %v460 = vld [vmem:[#allocation7 + $0x64] sm:$0xf]
        %v461 = vld [vmem:[#allocation7 + $0x68] sm:$0xf]
        %v462 = vld [vmem:[#allocation7 + $0x6c] sm:$0xf]
        %v463 = vld [vmem:[#allocation7 + $0x70] sm:$0xf]
        %v464 = vld [vmem:[#allocation7 + $0x74] sm:$0xf]
        %v465 = vld [vmem:[#allocation7 + $0x78] sm:$0xf]
        %v466 = vld [vmem:[#allocation7 + $0x7c] sm:$0xf]
        %v467 = vld [vmem:[%s4] sm:$0x1]
        %v469 = vlaneseq
        %v470 = vshrl.u32 %v469, 7
        %v471 = vsub.s32 0, %v470
        %v472 = vrot.slane %v467, %v471
        %v506 = vunpack.c.l.b16 %v435
        %v507 = vunpack.c.l.b16 %v436
        %v508 = vunpack.c.l.b16 %v437
        %v509 = vunpack.c.l.b16 %v438
        %v510 = vunpack.c.l.b16 %v439
        %v511 = vunpack.c.l.b16 %v440
        %v512 = vunpack.c.l.b16 %v441
        %v513 = vunpack.c.l.b16 %v442
        %v514 = vunpack.c.l.b16 %v443
        %v515 = vunpack.c.l.b16 %v444
        %v516 = vunpack.c.l.b16 %v445
        %v517 = vunpack.c.l.b16 %v446
        %v518 = vunpack.c.l.b16 %v447
        %v519 = vunpack.c.l.b16 %v448
        %v520 = vunpack.c.l.b16 %v449
        %v521 = vunpack.c.l.b16 %v450
        %v522 = vunpack.c.l.b16 %v451
        %v523 = vunpack.c.l.b16 %v452
        %v524 = vunpack.c.l.b16 %v453
        %v525 = vunpack.c.l.b16 %v454
        %v526 = vunpack.c.l.b16 %v455
        %v527 = vunpack.c.l.b16 %v456
        %v528 = vunpack.c.l.b16 %v457
        %v529 = vunpack.c.l.b16 %v458
        %v530 = vunpack.c.l.b16 %v459
        %v531 = vunpack.c.l.b16 %v460
        %v532 = vunpack.c.l.b16 %v461
        %v533 = vunpack.c.l.b16 %v462
        %v534 = vunpack.c.l.b16 %v463
        %v535 = vunpack.c.l.b16 %v464
        %v536 = vunpack.c.l.b16 %v465
        %v537 = vunpack.c.l.b16 %v466
        %v538 = vpack.c.b16 %v507, %v506
        %v539 = vpack.c.b16 %v509, %v508
        %v540 = vpack.c.b16 %v511, %v510
        %v541 = vpack.c.b16 %v513, %v512
        %v542 = vpack.c.b16 %v515, %v514
        %v543 = vpack.c.b16 %v517, %v516
        %v544 = vpack.c.b16 %v519, %v518
        %v545 = vpack.c.b16 %v521, %v520
        %v546 = vpack.c.b16 %v523, %v522
        %v547 = vpack.c.b16 %v525, %v524
        %v548 = vpack.c.b16 %v527, %v526
        %v549 = vpack.c.b16 %v529, %v528
        %v550 = vpack.c.b16 %v531, %v530
        %v551 = vpack.c.b16 %v533, %v532
        %v552 = vpack.c.b16 %v535, %v534
        %v553 = vpack.c.b16 %v537, %v536
        %570 = vmatprep.subr.bf16.mxu0 0
        %571 = vmatpush1.bf16.msra.mxu0 %v538
        %572 = vmatprep.subr.bf16.mxu0 0
        %573 = vmatpush1.bf16.msra.mxu0 %v539
        %574 = vmatprep.subr.bf16.mxu0 0
        %575 = vmatpush1.bf16.msra.mxu0 %v540
        %576 = vmatprep.subr.bf16.mxu0 0
        %577 = vmatpush1.bf16.msra.mxu0 %v541
        %578 = vmatprep.subr.bf16.mxu0 0
        %579 = vmatpush1.bf16.msra.mxu0 %v542
        %580 = vmatprep.subr.bf16.mxu0 0
        %581 = vmatpush1.bf16.msra.mxu0 %v543
        %582 = vmatprep.subr.bf16.mxu0 0
        %583 = vmatpush1.bf16.msra.mxu0 %v544
        %584 = vmatprep.subr.bf16.mxu0 0
        %585 = vmatpush1.bf16.msra.mxu0 %v545
        %586 = vmatprep.subr.bf16.mxu0 0
        %587 = vmatpush1.bf16.msra.mxu0 %v546
        %588 = vmatprep.subr.bf16.mxu0 0
        %589 = vmatpush1.bf16.msra.mxu0 %v547
        %590 = vmatprep.subr.bf16.mxu0 0
        %591 = vmatpush1.bf16.msra.mxu0 %v548
        %592 = vmatprep.subr.bf16.mxu0 0
        %593 = vmatpush1.bf16.msra.mxu0 %v549
        %594 = vmatprep.subr.bf16.mxu0 0
        %595 = vmatpush1.bf16.msra.mxu0 %v550
        %596 = vmatprep.subr.bf16.mxu0 0
        %597 = vmatpush1.bf16.msra.mxu0 %v551
        %598 = vmatprep.subr.bf16.mxu0 0
        %599 = vmatpush1.bf16.msra.mxu0 %v552
        %600 = vmatprep.subr.bf16.mxu0 0
        %601 = vmatpush1.bf16.msra.mxu0 %v553
        %602 = vmatprep.mubr.bf16.mxu0 %v434
        %603 = vmatmul.mubr.bf16.gmra.mrb[0].mxu0 %v433
        %v604 = vpop.f32.mrb[0].mxu0
        %v605 = vadd.f32 %v472, %v604
        %v606 = vpop.f32.mrb[0].mxu0
        %v607 = vpop.f32.mrb[0].mxu0
        %v608 = vadd.f32 %v472, %v607
        %v609 = vpop.f32.mrb[0].mxu0
        %610 = vdwg.mxu0
        %611 = vst [vmem:[%s271] sm:$0xff] %v605
        %612 = vst [vmem:[%s271 + $0x8] sm:$0xff] %v608
        %s613 = sand.u32 %s141, 1
        %s614 = scalar_lea.sflag [#allocation4], %s613
        %s615 = sand.u32 %s141, 1
        %s616 = smul.addr %s615, 16
        %s617 = scalar_lea.vmem [#allocation8], %s616
        // Predicated region
        $region53: #{tpu_custom_call.1} parent=39 // pred_check
          %p618 = pneg %p151
        $region54: #{tpu_custom_call.1} parent=39 // pred_check_branch
          %620 = sbr.rel (%p618) target = $region56
        $region55: #{tpu_custom_call.1} parent=39 // pred_region
          %s621 = smul.u32 2, %s23
          %s623 = ssub.s32 256, 256
          %624 = vsyncadd %s614, %s623
          %s625 = smul.addr %s621, 128
          %s626 = scalar_lea.hbm %s5, %s625
          %s627 = sshll.u32 %s617, 4
          %s628 = int_to_ptr.vmem [resolvable:$true] %s627
          %633 = dma.vmem_to_hbm [thread:$0]  %s628, 256, %s626, %s614, 128, 128, 8
        $region56: #{tpu_custom_call.1} parent=39 // pred_fallthru
          _
      $region40: #{tpu_custom_call.1} parent=5 // pred_fallthru
        _
      %p634 = scmp.le.s32.totalorder 2, %s18
      // Predicated region
      $region57: #{tpu_custom_call.1} parent=5 // pred_check
        %p635 = pneg %p634
      $region58: #{tpu_custom_call.1} parent=5 // pred_check_branch
        %637 = sbr.rel (%p635) target = $region60
      $region59: #{tpu_custom_call.1} parent=5 // pred_region
        %s638 = ssub.s32 %s18, 2
        // Predicated region
        $region61: #{tpu_custom_call.1} parent=59 // pred_check
          %p639 = pneg %p157
        $region62: #{tpu_custom_call.1} parent=59 // pred_check_branch
          %641 = sbr.rel (%p639) target = $region64
        $region63: #{tpu_custom_call.1} parent=59 // pred_region
          %s642 = sand.u32 %s142, 1
          %s643 = scalar_lea.sflag [#allocation4], %s642
          %s644 = sand.u32 %s142, 1
          %s645 = smul.addr %s644, 16
          %s646 = scalar_lea.vmem [#allocation8], %s645
          %647 = dma.done %s643, 256
        $region64: #{tpu_custom_call.1} parent=59 // pred_fallthru
          _
      $region60: #{tpu_custom_call.1} parent=5 // pred_fallthru
        _
    $region6: #{tpu_custom_call.1} parent=1 // loop_footer
      %s22 = sadd.s32 1, %s18
    $region7: #{tpu_custom_call.1} parent=1 // loop_footer_branch
      %17 = sbr.rel target = $region3
    $region8: #{tpu_custom_call.1} parent=1 // loop_exit
      _
    %648 = vsyncpa [#allocation3], 1
    %s649 = scalar_lea.sflag [#allocation3], 1
    %650 = vsyncpa %s649, 1
    %651 = vsyncpa [#allocation6], 1
    %652 = vsyncpa [#allocation4], 1
    %s653 = scalar_lea.sflag [#allocation4], 1
    %654 = vsyncpa %s653, 1

// kernel: tpu_custom_call.1
$region0: #{tpu_custom_call.1}
  #allocation0 [shape = 'u32[]', space=smem, size = 0x4, offset = 0x4, fixed_abs, tag = 'smem constant byte address 0x4 - core index']
  #allocation1 [shape = 'u32[144,128]{1,0:T(1,128)}', space=vmem, size = 0x12000, scoped, tag = 'internal scratch']
  %s0 = inlined_call_operand.hbm [shape: f32[64,128], index: 0, kind: input, shape index: {}]
  %s1 = inlined_call_operand.hbm [shape: bf16[128,256], index: 1, kind: input, shape index: {}]
  %s2 = inlined_call_operand.vmem [shape: f32[1,256], index: 2, kind: input, shape index: {}]
  %s3 = inlined_call_operand.hbm [shape: bf16[256,128], index: 3, kind: input, shape index: {}]
  %s4 = inlined_call_operand.vmem [shape: f32[1,128], index: 4, kind: input, shape index: {}]
  %s5 = inlined_call_operand.hbm [shape: f32[64,128], index: 5, kind: output, shape index: {}]
  %s6 = sld [smem:[#allocation0]]
  $region65: #{tpu_custom_call.1} parent=0
    _
  %s8 = ssub.s32 1, %s6
  %s9 = scalar_select 0, %s8, %s6
  $region1: #{tpu_custom_call.1} parent=0
    #allocation2 [shape = 'u8[16384]{0}', space=vmem, size = 0x4000, scoped, tag = 'input window, operand 0']
    #allocation3 [shape = 's32[2]{0}', space=sflag, size = 0x8, scoped, tag = 'scoped memory for tpu_custom_call.1']
    #allocation4 [shape = 's32[2]{0}', space=sflag, size = 0x8, scoped, tag = 'scoped memory for tpu_custom_call.1']
    #allocation5 [shape = 'u8[65536]{0}', space=vmem, size = 0x10000, scoped, tag = 'input window, operand 1, single buffered']
    #allocation6 [shape = 's32[1]{0}', space=sflag, size = 0x4, scoped, tag = 'scoped memory for tpu_custom_call.1']
    #allocation7 [shape = 'u8[65536]{0}', space=vmem, size = 0x10000, scoped, tag = 'input window, operand 3, single buffered']
    #allocation8 [shape = 'u8[16384]{0}', space=vmem, size = 0x4000, scoped, tag = 'output window, operand 0']
    %10 = vsyncpa [#allocation3], 0
    %s11 = scalar_lea.sflag [#allocation3], 1
    %12 = vsyncpa %s11, 0
    %13 = vsyncpa [#allocation6], 0
    %14 = vsyncpa [#allocation4], 0
    %s15 = scalar_lea.sflag [#allocation4], 1
    %16 = vsyncpa %s15, 0
    loop: start=0, step=1, limit=6
    $region2: #{tpu_custom_call.1} parent=1 // loop_pre_header
      _
    $region3: #{tpu_custom_call.1} parent=1 // loop_header
      %s18 = sphi 0, %s22
      %p19 = scmp.ge.s32.totalorder %s18, 6
      %s28 = sphi 0, %s30
      %s31 = sphi 0, %s28
      %s32 = sphi 0, %s31
      %s48 = sphi 0, %s32
      %s52 = sphi 0, %s52
      %s54 = sphi 0, %s52
      %s55 = sphi 0, %s54
      %s69 = sphi 0, %s55
      %s73 = sphi 0, %s73
      %s75 = sphi 0, %s73
      %s76 = sphi 0, %s75
      %s90 = sphi 0, %s76
      %s94 = sphi 0, %s94
      %s96 = sphi 0, %s94
      %s97 = sphi 0, %s96
      %s111 = sphi 0, %s97
      %s115 = sphi 0, %s115
      %s117 = sphi 0, %s115
      %s118 = sphi 0, %s117
      %s132 = sphi 0, %s118
      %s138 = sphi 0, %s140
      %s141 = sphi 0, %s138
      %s142 = sphi 0, %s141
      %s158 = sphi 0, %s142
    $region4: #{tpu_custom_call.1} parent=1 // loop_header_branch
      %21 = sbr.rel (%p19) target = $region8
    $region5: #{tpu_custom_call.1} parent=1 // loop_body
      %s23 = ssub.s32 %s18, 1
      %s24 = ssub.s32 %s18, 2
      %s25 = sadd.s32 %s18, 1
      %s26 = ssub.s32 %s18, %s25
      %p27 = scmp.eq.s32.totalorder %s26, 0
      %s29 = sadd.s32 %s28, 1
      %s30 = scalar_select %p27, %s28, %s29
      %p33 = pneg %p27
      %p34 = scmp.eq.s32.totalorder %s18, 3
      %p35 = por %p33, %p34
      %p36 = scmp.ne.s32.totalorder %s28, %s31
      %p37 = scmp.eq.s32.totalorder %s18, 0
      %p38 = por %p36, %p37
      %p39 = scmp.ne.s32.totalorder %s28, %s31
      %p40 = scmp.eq.s32.totalorder %s23, 3
      %p41 = por %p39, %p40
      %p42 = scmp.ne.s32.totalorder %s31, %s32
      %p43 = scmp.eq.s32.totalorder %s23, 0
      %p44 = por %p42, %p43
      %p45 = scmp.ne.s32.totalorder %s31, %s32
      %p46 = scmp.eq.s32.totalorder %s24, 3
      %p47 = por %p45, %p46
      %p49 = scmp.ne.s32.totalorder %s32, %s48
      %p50 = scmp.eq.s32.totalorder %s24, 0
      %p51 = por %p49, %p50
      %s53 = sadd.s32 %s52, 1
      %p56 = scmp.eq.s32.totalorder %s18, 3
      %p57 = scmp.ne.s32.totalorder %s52, %s54
      %p58 = scmp.eq.s32.totalorder %s18, 0
      %p59 = por %p57, %p58
      %p60 = scmp.ne.s32.totalorder %s52, %s54
      %p61 = scmp.eq.s32.totalorder %s23, 3
      %p62 = por %p60, %p61
      %p63 = scmp.ne.s32.totalorder %s54, %s55
      %p64 = scmp.eq.s32.totalorder %s23, 0
      %p65 = por %p63, %p64
      %p66 = scmp.ne.s32.totalorder %s54, %s55
      %p67 = scmp.eq.s32.totalorder %s24, 3
      %p68 = por %p66, %p67
      %p70 = scmp.ne.s32.totalorder %s55, %s69
      %p71 = scmp.eq.s32.totalorder %s24, 0
      %p72 = por %p70, %p71
      %s74 = sadd.s32 %s73, 1
      %p77 = scmp.eq.s32.totalorder %s18, 3
      %p78 = scmp.ne.s32.totalorder %s73, %s75
      %p79 = scmp.eq.s32.totalorder %s18, 0
      %p80 = por %p78, %p79
      %p81 = scmp.ne.s32.totalorder %s73, %s75
      %p82 = scmp.eq.s32.totalorder %s23, 3
      %p83 = por %p81, %p82
      %p84 = scmp.ne.s32.totalorder %s75, %s76
      %p85 = scmp.eq.s32.totalorder %s23, 0
      %p86 = por %p84, %p85
      %p87 = scmp.ne.s32.totalorder %s75, %s76
      %p88 = scmp.eq.s32.totalorder %s24, 3
      %p89 = por %p87, %p88
      %p91 = scmp.ne.s32.totalorder %s76, %s90
      %p92 = scmp.eq.s32.totalorder %s24, 0
      %p93 = por %p91, %p92
      %s95 = sadd.s32 %s94, 1
      %p98 = scmp.eq.s32.totalorder %s18, 3
      %p99 = scmp.ne.s32.totalorder %s94, %s96
      %p100 = scmp.eq.s32.totalorder %s18, 0
      %p101 = por %p99, %p100
      %p102 = scmp.ne.s32.totalorder %s94, %s96
      %p103 = scmp.eq.s32.totalorder %s23, 3
      %p104 = por %p102, %p103
      %p105 = scmp.ne.s32.totalorder %s96, %s97
      %p106 = scmp.eq.s32.totalorder %s23, 0
      %p107 = por %p105, %p106
      %p108 = scmp.ne.s32.totalorder %s96, %s97
      %p109 = scmp.eq.s32.totalorder %s24, 3
      %p110 = por %p108, %p109
      %p112 = scmp.ne.s32.totalorder %s97, %s111
      %p113 = scmp.eq.s32.totalorder %s24, 0
      %p114 = por %p112, %p113
      %s116 = sadd.s32 %s115, 1
      %p119 = scmp.eq.s32.totalorder %s18, 3
      %p120 = scmp.ne.s32.totalorder %s115, %s117
      %p121 = scmp.eq.s32.totalorder %s18, 0
      %p122 = por %p120, %p121
      %p123 = scmp.ne.s32.totalorder %s115, %s117
      %p124 = scmp.eq.s32.totalorder %s23, 3
      %p125 = por %p123, %p124
      %p126 = scmp.ne.s32.totalorder %s117, %s118
      %p127 = scmp.eq.s32.totalorder %s23, 0
      %p128 = por %p126, %p127
      %p129 = scmp.ne.s32.totalorder %s117, %s118
      %p130 = scmp.eq.s32.totalorder %s24, 3
      %p131 = por %p129, %p130
      %p133 = scmp.ne.s32.totalorder %s118, %s132
      %p134 = scmp.eq.s32.totalorder %s24, 0
      %p135 = por %p133, %p134
      %s136 = ssub.s32 %s18, %s25
      %p137 = scmp.eq.s32.totalorder %s136, 0
      %s139 = sadd.s32 %s138, 1
      %s140 = scalar_select %p137, %s138, %s139
      %p143 = pneg %p137
      %p144 = scmp.eq.s32.totalorder %s18, 3
      %p145 = por %p143, %p144
      %p146 = scmp.ne.s32.totalorder %s138, %s141
      %p147 = scmp.eq.s32.totalorder %s18, 0
      %p148 = por %p146, %p147
      %p149 = scmp.ne.s32.totalorder %s138, %s141
      %p150 = scmp.eq.s32.totalorder %s23, 3
      %p151 = por %p149, %p150
      %p152 = scmp.ne.s32.totalorder %s141, %s142
      %p153 = scmp.eq.s32.totalorder %s23, 0
      %p154 = por %p152, %p153
      %p155 = scmp.ne.s32.totalorder %s141, %s142
      %p156 = scmp.eq.s32.totalorder %s24, 3
      %p157 = por %p155, %p156
      %p159 = scmp.ne.s32.totalorder %s142, %s158
      %p160 = scmp.eq.s32.totalorder %s24, 0
      %p161 = por %p159, %p160
      %p162 = scmp.le.s32.totalorder 1, %s18
      %p163 = scmp.lt.s32.totalorder %s18, 5
      %p164 = pnand %p162, %p163
      %p165 = pneg %p164
      // Predicated region
      $region9: #{tpu_custom_call.1} parent=5 // pred_check
        _
      $region10: #{tpu_custom_call.1} parent=5 // pred_check_branch
        %167 = sbr.rel (%p164) target = $region12
      $region11: #{tpu_custom_call.1} parent=5 // pred_region
        %s168 = ssub.s32 %s18, 1
        // Predicated region
        $region13: #{tpu_custom_call.1} parent=11 // pred_check
          %p169 = pneg %p65
        $region14: #{tpu_custom_call.1} parent=11 // pred_check_branch
          %171 = sbr.rel (%p169) target = $region16
        $region15: #{tpu_custom_call.1} parent=11 // pred_region
          %s173 = ssub.s32 2048, 2048
          %174 = vsyncadd [#allocation6], %s173
          %s175 = sshll.u32 [#allocation5], 4
          %s176 = int_to_ptr.vmem [resolvable:$true] %s175
          %181 = dma.hbm_to_vmem [thread:$0]  %s1, 2048, %s176, [#allocation6], 128, 128, 8
        $region16: #{tpu_custom_call.1} parent=11 // pred_fallthru
          _
        // Predicated region
        $region17: #{tpu_custom_call.1} parent=11 // pred_check
          %p182 = pneg %p86
        $region18: #{tpu_custom_call.1} parent=11 // pred_check_branch
          %184 = sbr.rel (%p182) target = $region20
        $region19: #{tpu_custom_call.1} parent=11 // pred_region
          _
        $region20: #{tpu_custom_call.1} parent=11 // pred_fallthru
          _
        // Predicated region
        $region21: #{tpu_custom_call.1} parent=11 // pred_check
          %p185 = pneg %p107
        $region22: #{tpu_custom_call.1} parent=11 // pred_check_branch
          %187 = sbr.rel (%p185) target = $region24
        $region23: #{tpu_custom_call.1} parent=11 // pred_region
          %s189 = ssub.s32 2048, 2048
          %190 = vsyncadd [#allocation6], %s189
          %s191 = sshll.u32 [#allocation7], 4
          %s192 = int_to_ptr.vmem [resolvable:$true] %s191
          %197 = dma.hbm_to_vmem [thread:$0]  %s3, 2048, %s192, [#allocation6], 64, 64, 4
        $region24: #{tpu_custom_call.1} parent=11 // pred_fallthru
          _
        // Predicated region
        $region25: #{tpu_custom_call.1} parent=11 // pred_check
          %p198 = pneg %p128
        $region26: #{tpu_custom_call.1} parent=11 // pred_check_branch
          %200 = sbr.rel (%p198) target = $region28
        $region27: #{tpu_custom_call.1} parent=11 // pred_region
          _
        $region28: #{tpu_custom_call.1} parent=11 // pred_fallthru
          _
      $region12: #{tpu_custom_call.1} parent=5 // pred_fallthru
        _
      %p201 = scmp.lt.s32.totalorder %s18, 4
      // Predicated region
      $region29: #{tpu_custom_call.1} parent=5 // pred_check
        %p202 = pneg %p201
      $region30: #{tpu_custom_call.1} parent=5 // pred_check_branch
        %204 = sbr.rel (%p202) target = $region32
      $region31: #{tpu_custom_call.1} parent=5 // pred_region
        // Predicated region
        $region33: #{tpu_custom_call.1} parent=31 // pred_check
          %p205 = pneg %p38
        $region34: #{tpu_custom_call.1} parent=31 // pred_check_branch
          %207 = sbr.rel (%p205) target = $region36
        $region35: #{tpu_custom_call.1} parent=31 // pred_region
          %s208 = sand.u32 %s28, 1
          %s209 = scalar_lea.sflag [#allocation3], %s208
          %s210 = sand.u32 %s28, 1
          %s211 = smul.addr %s210, 16
          %s212 = scalar_lea.vmem [#allocation2], %s211
          %s213 = smul.u32 2, %s18
          %s215 = ssub.s32 256, 256
          %216 = vsyncadd %s209, %s215
          %s217 = smul.addr %s213, 128
          %s218 = scalar_lea.hbm %s0, %s217
          %s219 = sshll.u32 %s212, 4
          %s220 = int_to_ptr.vmem [resolvable:$true] %s219
          %225 = dma.hbm_to_vmem [thread:$0]  %s218, 256, %s220, %s209, 128, 128, 8
        $region36: #{tpu_custom_call.1} parent=31 // pred_fallthru
          _
      $region32: #{tpu_custom_call.1} parent=5 // pred_fallthru
        _
      %p226 = scmp.le.s32.totalorder 1, %s18
      %p227 = scmp.lt.s32.totalorder %s18, 5
      %p228 = pnand %p226, %p227
      %p229 = pneg %p228
      // Predicated region
      $region37: #{tpu_custom_call.1} parent=5 // pred_check
        _
      $region38: #{tpu_custom_call.1} parent=5 // pred_check_branch
        %231 = sbr.rel (%p228) target = $region40
      $region39: #{tpu_custom_call.1} parent=5 // pred_region
        %s232 = ssub.s32 %s18, 1
        %s233 = sand.u32 %s31, 1
        %s234 = scalar_lea.sflag [#allocation3], %s233
        %s235 = sand.u32 %s31, 1
        %s236 = smul.addr %s235, 16
        %s237 = scalar_lea.vmem [#allocation2], %s236
        // Predicated region
        $region41: #{tpu_custom_call.1} parent=39 // pred_check
          %p238 = pneg %p44
        $region42: #{tpu_custom_call.1} parent=39 // pred_check_branch
          %240 = sbr.rel (%p238) target = $region44
        $region43: #{tpu_custom_call.1} parent=39 // pred_region
          %241 = dma.done %s234, 256
        $region44: #{tpu_custom_call.1} parent=39 // pred_fallthru
          _
        // Predicated region
        $region45: #{tpu_custom_call.1} parent=39 // pred_check
          %p242 = pneg %p65
        $region46: #{tpu_custom_call.1} parent=39 // pred_check_branch
          %244 = sbr.rel (%p242) target = $region48
        $region47: #{tpu_custom_call.1} parent=39 // pred_region
          %245 = dma.done [#allocation6], 2048
        $region48: #{tpu_custom_call.1} parent=39 // pred_fallthru
          _
        // Predicated region
        $region49: #{tpu_custom_call.1} parent=39 // pred_check
          %p246 = pneg %p107
        $region50: #{tpu_custom_call.1} parent=39 // pred_check_branch
          %248 = sbr.rel (%p246) target = $region52
        $region51: #{tpu_custom_call.1} parent=39 // pred_region
          %249 = dma.done [#allocation6], 2048
        $region52: #{tpu_custom_call.1} parent=39 // pred_fallthru
          _
        %s250 = sand.u32 %s31, 1
        %s251 = scalar_lea.sflag [#allocation3], %s250
        %s252 = sand.u32 %s31, 1
        %s253 = smul.addr %s252, 16
        %s254 = scalar_lea.vmem [#allocation2], %s253
        %p255 = pneg %p44
        %p256 = pneg %p41
        %p257 = pneg %p65
        %p258 = pneg %p62
        %p259 = pneg %p86
        %p260 = pneg %p83
        %p261 = pneg %p107
        %p262 = pneg %p104
        %p263 = pneg %p128
        %p264 = pneg %p125
        %p265 = pneg %p154
        %p266 = pneg %p151
        %s267 = sand.u32 %s141, 1
        %s268 = scalar_lea.sflag [#allocation4], %s267
        %s269 = sand.u32 %s141, 1
        %s270 = smul.addr %s269, 16
        %s271 = scalar_lea.vmem [#allocation8], %s270
        %s272 = smul.u32 2, %s23
        %s273 = smul.u32 2, %s23
        %v275 = vld [vmem:[%s237] sm:$0xff]
        %v276 = vld [vmem:[%s237 + $0x8] sm:$0xff]
        %v277 = vpack.c.bf16 %v276, %v275
        %v278 = vld [vmem:[#allocation5] sm:$0xff]
        %v279 = vld [vmem:[#allocation5 + $0x8] sm:$0xff]
        %v280 = vld [vmem:[#allocation5 + $0x10] sm:$0xff]
        %v281 = vld [vmem:[#allocation5 + $0x18] sm:$0xff]
        %v282 = vld [vmem:[#allocation5 + $0x20] sm:$0xff]
        %v283 = vld [vmem:[#allocation5 + $0x28] sm:$0xff]
        %v284 = vld [vmem:[#allocation5 + $0x30] sm:$0xff]
        %v285 = vld [vmem:[#allocation5 + $0x38] sm:$0xff]
        %v286 = vld [vmem:[#allocation5 + $0x40] sm:$0xff]
        %v287 = vld [vmem:[#allocation5 + $0x48] sm:$0xff]
        %v288 = vld [vmem:[#allocation5 + $0x50] sm:$0xff]
        %v289 = vld [vmem:[#allocation5 + $0x58] sm:$0xff]
        %v290 = vld [vmem:[#allocation5 + $0x60] sm:$0xff]
        %v291 = vld [vmem:[#allocation5 + $0x68] sm:$0xff]
        %v292 = vld [vmem:[#allocation5 + $0x70] sm:$0xff]
        %v293 = vld [vmem:[#allocation5 + $0x78] sm:$0xff]
        %v294 = vld [vmem:[%s2] sm:$0x3]
        %v296 = vlaneseq
        %v297 = vshrl.u32 %v296, 7
        %v298 = vsub.s32 0, %v297
        %v299 = vrot.slane %v294, %v298
        %v300 = vlaneseq
        %v301 = vshrl.u32 %v300, 7
        %v302 = vsub.s32 1, %v301
        %v303 = vrot.slane %v294, %v302
        %v322 = vunpack.c.l.b16 %v278
        %v323 = vunpack.c.h.b16 %v278
        %v324 = vunpack.c.l.b16 %v279
        %v325 = vunpack.c.h.b16 %v279
        %v326 = vunpack.c.l.b16 %v280
        %v327 = vunpack.c.h.b16 %v280
        %v328 = vunpack.c.l.b16 %v281
        %v329 = vunpack.c.h.b16 %v281
        %v330 = vunpack.c.l.b16 %v282
        %v331 = vunpack.c.h.b16 %v282
        %v332 = vunpack.c.l.b16 %v283
        %v333 = vunpack.c.h.b16 %v283
        %v334 = vunpack.c.l.b16 %v284
        %v335 = vunpack.c.h.b16 %v284
        %v336 = vunpack.c.l.b16 %v285
        %v337 = vunpack.c.h.b16 %v285
        %v338 = vunpack.c.l.b16 %v286
        %v339 = vunpack.c.h.b16 %v286
        %v340 = vunpack.c.l.b16 %v287
        %v341 = vunpack.c.h.b16 %v287
        %v342 = vunpack.c.l.b16 %v288
        %v343 = vunpack.c.h.b16 %v288
        %v344 = vunpack.c.l.b16 %v289
        %v345 = vunpack.c.h.b16 %v289
        %v346 = vunpack.c.l.b16 %v290
        %v347 = vunpack.c.h.b16 %v290
        %v348 = vunpack.c.l.b16 %v291
        %v349 = vunpack.c.h.b16 %v291
        %v350 = vunpack.c.l.b16 %v292
        %v351 = vunpack.c.h.b16 %v292
        %v352 = vunpack.c.l.b16 %v293
        %v353 = vunpack.c.h.b16 %v293
        %v354 = vpack.c.b16 %v324, %v322
        %v355 = vpack.c.b16 %v325, %v323
        %v356 = vpack.c.b16 %v328, %v326
        %v357 = vpack.c.b16 %v329, %v327
        %v358 = vpack.c.b16 %v332, %v330
        %v359 = vpack.c.b16 %v333, %v331
        %v360 = vpack.c.b16 %v336, %v334
        %v361 = vpack.c.b16 %v337, %v335
        %v362 = vpack.c.b16 %v340, %v338
        %v363 = vpack.c.b16 %v341, %v339
        %v364 = vpack.c.b16 %v344, %v342
        %v365 = vpack.c.b16 %v345, %v343
        %v366 = vpack.c.b16 %v348, %v346
        %v367 = vpack.c.b16 %v349, %v347
        %v368 = vpack.c.b16 %v352, %v350
        %v369 = vpack.c.b16 %v353, %v351
        %386 = vmatprep.subr.bf16.mxu0 %v355
        %387 = vmatpush1.bf16.msra.mxu0 %v354
        %388 = vmatprep.subr.bf16.mxu0 %v357
        %389 = vmatpush1.bf16.msra.mxu0 %v356
        %390 = vmatprep.subr.bf16.mxu0 %v359
        %391 = vmatpush1.bf16.msra.mxu0 %v358
        %392 = vmatprep.subr.bf16.mxu0 %v361
        %393 = vmatpush1.bf16.msra.mxu0 %v360
        %394 = vmatprep.subr.bf16.mxu0 %v363
        %395 = vmatpush1.bf16.msra.mxu0 %v362
        %396 = vmatprep.subr.bf16.mxu0 %v365
        %397 = vmatpush1.bf16.msra.mxu0 %v364
        %398 = vmatprep.subr.bf16.mxu0 %v367
        %399 = vmatpush1.bf16.msra.mxu0 %v366
        %400 = vmatprep.subr.bf16.mxu0 %v369
        %401 = vmatpush1.bf16.msra.mxu0 %v368
        %402 = vmatprep.subr.bf16.mxu0 0
        %403 = vmatpush1.bf16.msra.mxu0 0
        %404 = vmatprep.subr.bf16.mxu0 0
        %405 = vmatpush1.bf16.msra.mxu0 0
        %406 = vmatprep.subr.bf16.mxu0 0
        %407 = vmatpush1.bf16.msra.mxu0 0
        %408 = vmatprep.subr.bf16.mxu0 0
        %409 = vmatpush1.bf16.msra.mxu0 0
        %410 = vmatprep.subr.bf16.mxu0 0
        %411 = vmatpush1.bf16.msra.mxu0 0
        %412 = vmatprep.subr.bf16.mxu0 0
        %413 = vmatpush1.bf16.msra.mxu0 0
        %414 = vmatprep.subr.bf16.mxu0 0
        %415 = vmatpush1.bf16.msra.mxu0 0
        %416 = vmatprep.subr.bf16.mxu0 0
        %417 = vmatpush1.bf16.msra.mxu0 0
        %418 = vmatprep.mubr.bf16.mxu0 0
        %419 = vmatmul.mubr.bf16.gmra.mrb[0].mxu0 %v277
        %v420 = vpop.f32.mrb[0].mxu0
        %v421 = vadd.f32 %v299, %v420
        %v422 = vpop.f32.mrb[0].mxu0
        %v423 = vadd.f32 %v303, %v422
        %v424 = vpop.f32.mrb[0].mxu0
        %v425 = vadd.f32 %v299, %v424
        %v426 = vpop.f32.mrb[0].mxu0
        %v427 = vadd.f32 %v303, %v426
        %428 = vdwg.mxu0
        %v429 = vmax.f32 %v421, 0.0
        %v430 = vmax.f32 %v423, 0.0
        %v431 = vmax.f32 %v425, 0.0
        %v432 = vmax.f32 %v427, 0.0
        %v433 = vpack.c.bf16 %v431, %v429
        %v434 = vpack.c.bf16 %v432, %v430
        %v435 = vld [vmem:[#allocation7] sm:$0xf]
        %v436 = vld [vmem:[#allocation7 + $0x4] sm:$0xf]
        %v437 = vld [vmem:[#allocation7 + $0x8] sm:$0xf]
        %v438 = vld [vmem:[#allocation7 + $0xc] sm:$0xf]
        %v439 = vld [vmem:[#allocation7 + $0x10] sm:$0xf]
        %v440 = vld [vmem:[#allocation7 + $0x14] sm:$0xf]
        %v441 = vld [vmem:[#allocation7 + $0x18] sm:$0xf]
        %v442 = vld [vmem:[#allocation7 + $0x1c] sm:$0xf]
        %v443 = vld [vmem:[#allocation7 + $0x20] sm:$0xf]
        %v444 = vld [vmem:[#allocation7 + $0x24] sm:$0xf]
        %v445 = vld [vmem:[#allocation7 + $0x28] sm:$0xf]
        %v446 = vld [vmem:[#allocation7 + $0x2c] sm:$0xf]
        %v447 = vld [vmem:[#allocation7 + $0x30] sm:$0xf]
        %v448 = vld [vmem:[#allocation7 + $0x34] sm:$0xf]
        %v449 = vld [vmem:[#allocation7 + $0x38] sm:$0xf]
        %v450 = vld [vmem:[#allocation7 + $0x3c] sm:$0xf]
        %v451 = vld [vmem:[#allocation7 + $0x40] sm:$0xf]
        %v452 = vld [vmem:[#allocation7 + $0x44] sm:$0xf]
        %v453 = vld [vmem:[#allocation7 + $0x48] sm:$0xf]
        %v454 = vld [vmem:[#allocation7 + $0x4c] sm:$0xf]
        %v455 = vld [vmem:[#allocation7 + $0x50] sm:$0xf]
        %v456 = vld [vmem:[#allocation7 + $0x54] sm:$0xf]
        %v457 = vld [vmem:[#allocation7 + $0x58] sm:$0xf]
        %v458 = vld [vmem:[#allocation7 + $0x5c] sm:$0xf]
        %v459 = vld [vmem:[#allocation7 + $0x60] sm:$0xf]
        %v460 = vld [vmem:[#allocation7 + $0x64] sm:$0xf]
        %v461 = vld [vmem:[#allocation7 + $0x68] sm:$0xf]
        %v462 = vld [vmem:[#allocation7 + $0x6c] sm:$0xf]
        %v463 = vld [vmem:[#allocation7 + $0x70] sm:$0xf]
        %v464 = vld [vmem:[#allocation7 + $0x74] sm:$0xf]
        %v465 = vld [vmem:[#allocation7 + $0x78] sm:$0xf]
        %v466 = vld [vmem:[#allocation7 + $0x7c] sm:$0xf]
        %v467 = vld [vmem:[%s4] sm:$0x1]
        %v469 = vlaneseq
        %v470 = vshrl.u32 %v469, 7
        %v471 = vsub.s32 0, %v470
        %v472 = vrot.slane %v467, %v471
        %v506 = vunpack.c.l.b16 %v435
        %v507 = vunpack.c.l.b16 %v436
        %v508 = vunpack.c.l.b16 %v437
        %v509 = vunpack.c.l.b16 %v438
        %v510 = vunpack.c.l.b16 %v439
        %v511 = vunpack.c.l.b16 %v440
        %v512 = vunpack.c.l.b16 %v441
        %v513 = vunpack.c.l.b16 %v442
        %v514 = vunpack.c.l.b16 %v443
        %v515 = vunpack.c.l.b16 %v444
        %v516 = vunpack.c.l.b16 %v445
        %v517 = vunpack.c.l.b16 %v446
        %v518 = vunpack.c.l.b16 %v447
        %v519 = vunpack.c.l.b16 %v448
        %v520 = vunpack.c.l.b16 %v449
        %v521 = vunpack.c.l.b16 %v450
        %v522 = vunpack.c.l.b16 %v451
        %v523 = vunpack.c.l.b16 %v452
        %v524 = vunpack.c.l.b16 %v453
        %v525 = vunpack.c.l.b16 %v454
        %v526 = vunpack.c.l.b16 %v455
        %v527 = vunpack.c.l.b16 %v456
        %v528 = vunpack.c.l.b16 %v457
        %v529 = vunpack.c.l.b16 %v458
        %v530 = vunpack.c.l.b16 %v459
        %v531 = vunpack.c.l.b16 %v460
        %v532 = vunpack.c.l.b16 %v461
        %v533 = vunpack.c.l.b16 %v462
        %v534 = vunpack.c.l.b16 %v463
        %v535 = vunpack.c.l.b16 %v464
        %v536 = vunpack.c.l.b16 %v465
        %v537 = vunpack.c.l.b16 %v466
        %v538 = vpack.c.b16 %v507, %v506
        %v539 = vpack.c.b16 %v509, %v508
        %v540 = vpack.c.b16 %v511, %v510
        %v541 = vpack.c.b16 %v513, %v512
        %v542 = vpack.c.b16 %v515, %v514
        %v543 = vpack.c.b16 %v517, %v516
        %v544 = vpack.c.b16 %v519, %v518
        %v545 = vpack.c.b16 %v521, %v520
        %v546 = vpack.c.b16 %v523, %v522
        %v547 = vpack.c.b16 %v525, %v524
        %v548 = vpack.c.b16 %v527, %v526
        %v549 = vpack.c.b16 %v529, %v528
        %v550 = vpack.c.b16 %v531, %v530
        %v551 = vpack.c.b16 %v533, %v532
        %v552 = vpack.c.b16 %v535, %v534
        %v553 = vpack.c.b16 %v537, %v536
        %570 = vmatprep.subr.bf16.mxu0 0
        %571 = vmatpush1.bf16.msra.mxu0 %v538
        %572 = vmatprep.subr.bf16.mxu0 0
        %573 = vmatpush1.bf16.msra.mxu0 %v539
        %574 = vmatprep.subr.bf16.mxu0 0
        %575 = vmatpush1.bf16.msra.mxu0 %v540
        %576 = vmatprep.subr.bf16.mxu0 0
        %577 = vmatpush1.bf16.msra.mxu0 %v541
        %578 = vmatprep.subr.bf16.mxu0 0
        %579 = vmatpush1.bf16.msra.mxu0 %v542
        %580 = vmatprep.subr.bf16.mxu0 0
        %581 = vmatpush1.bf16.msra.mxu0 %v543
        %582 = vmatprep.subr.bf16.mxu0 0
        %583 = vmatpush1.bf16.msra.mxu0 %v544
        %584 = vmatprep.subr.bf16.mxu0 0
        %585 = vmatpush1.bf16.msra.mxu0 %v545
        %586 = vmatprep.subr.bf16.mxu0 0
        %587 = vmatpush1.bf16.msra.mxu0 %v546
        %588 = vmatprep.subr.bf16.mxu0 0
        %589 = vmatpush1.bf16.msra.mxu0 %v547
        %590 = vmatprep.subr.bf16.mxu0 0
        %591 = vmatpush1.bf16.msra.mxu0 %v548
        %592 = vmatprep.subr.bf16.mxu0 0
        %593 = vmatpush1.bf16.msra.mxu0 %v549
        %594 = vmatprep.subr.bf16.mxu0 0
        %595 = vmatpush1.bf16.msra.mxu0 %v550
        %596 = vmatprep.subr.bf16.mxu0 0
        %597 = vmatpush1.bf16.msra.mxu0 %v551
        %598 = vmatprep.subr.bf16.mxu0 0
        %599 = vmatpush1.bf16.msra.mxu0 %v552
        %600 = vmatprep.subr.bf16.mxu0 0
        %601 = vmatpush1.bf16.msra.mxu0 %v553
        %602 = vmatprep.mubr.bf16.mxu0 %v434
        %603 = vmatmul.mubr.bf16.gmra.mrb[0].mxu0 %v433
        %v604 = vpop.f32.mrb[0].mxu0
        %v605 = vadd.f32 %v472, %v604
        %v606 = vpop.f32.mrb[0].mxu0
        %v607 = vpop.f32.mrb[0].mxu0
        %v608 = vadd.f32 %v472, %v607
        %v609 = vpop.f32.mrb[0].mxu0
        %610 = vdwg.mxu0
        %611 = vst [vmem:[%s271] sm:$0xff] %v605
        %612 = vst [vmem:[%s271 + $0x8] sm:$0xff] %v608
        %s613 = sand.u32 %s141, 1
        %s614 = scalar_lea.sflag [#allocation4], %s613
        %s615 = sand.u32 %s141, 1
        %s616 = smul.addr %s615, 16
        %s617 = scalar_lea.vmem [#allocation8], %s616
        // Predicated region
        $region53: #{tpu_custom_call.1} parent=39 // pred_check
          %p618 = pneg %p151
        $region54: #{tpu_custom_call.1} parent=39 // pred_check_branch
          %620 = sbr.rel (%p618) target = $region56
        $region55: #{tpu_custom_call.1} parent=39 // pred_region
          %s621 = smul.u32 2, %s23
          %s623 = ssub.s32 256, 256
          %624 = vsyncadd %s614, %s623
          %s625 = smul.addr %s621, 128
          %s626 = scalar_lea.hbm %s5, %s625
          %s627 = sshll.u32 %s617, 4
          %s628 = int_to_ptr.vmem [resolvable:$true] %s627
          %633 = dma.vmem_to_hbm [thread:$0]  %s628, 256, %s626, %s614, 128, 128, 8
        $region56: #{tpu_custom_call.1} parent=39 // pred_fallthru
          _
      $region40: #{tpu_custom_call.1} parent=5 // pred_fallthru
        _
      %p634 = scmp.le.s32.totalorder 2, %s18
      // Predicated region
      $region57: #{tpu_custom_call.1} parent=5 // pred_check
        %p635 = pneg %p634
      $region58: #{tpu_custom_call.1} parent=5 // pred_check_branch
        %637 = sbr.rel (%p635) target = $region60
      $region59: #{tpu_custom_call.1} parent=5 // pred_region
        %s638 = ssub.s32 %s18, 2
        // Predicated region
        $region61: #{tpu_custom_call.1} parent=59 // pred_check
          %p639 = pneg %p157
        $region62: #{tpu_custom_call.1} parent=59 // pred_check_branch
          %641 = sbr.rel (%p639) target = $region64
        $region63: #{tpu_custom_call.1} parent=59 // pred_region
          %s642 = sand.u32 %s142, 1
          %s643 = scalar_lea.sflag [#allocation4], %s642
          %s644 = sand.u32 %s142, 1
          %s645 = smul.addr %s644, 16
          %s646 = scalar_lea.vmem [#allocation8], %s645
          %647 = dma.done %s643, 256
        $region64: #{tpu_custom_call.1} parent=59 // pred_fallthru
          _
      $region60: #{tpu_custom_call.1} parent=5 // pred_fallthru
        _
    $region6: #{tpu_custom_call.1} parent=1 // loop_footer
      %s22 = sadd.s32 1, %s18
    $region7: #{tpu_custom_call.1} parent=1 // loop_footer_branch
      %17 = sbr.rel target = $region3
    $region8: #{tpu_custom_call.1} parent=1 // loop_exit
      _
    %648 = vsyncpa [#allocation3], 1
    %s649 = scalar_lea.sflag [#allocation3], 1
    %650 = vsyncpa %s649, 1
    %651 = vsyncpa [#allocation6], 1
    %652 = vsyncpa [#allocation4], 1
    %s653 = scalar_lea.sflag [#allocation4], 1
    %654 = vsyncpa %s653, 1

</llo_original>
